<compile_context>
chip_gen: v6e
topology: v6e:2x2x1
jax: 0.10.0
libtpu: 0.0.40
codegen_flags: <defaults>
</compile_context>

<pallas_src>
import math

import jax
import jax.numpy as jnp
from jax.experimental import pallas as pl
from jax.experimental.pallas import tpu as pltpu

# ----------------------------- problem sizes -------------------------------
SEQ = 8        # sequence_length
BATCH = 2      # batch_size
HIDDEN = 32    # hidden_size
DEPTH = 2      # hidden_layer_depth (kernel is specialized for 2)
LATENT = 16    # latent_length
OUTPUT = 4     # output_size

OUT_PAD = 128  # output projection padded to one full lane group (lane-dense store)

# ----------------------- packed f32 slab row layout -------------------------
# Slab width = 4*HIDDEN = 128 lanes.  All row offsets are multiples of 8 so
# every static ref slice is sublane-aligned.
R_WHH0 = 0                       # (H, 4H)       recurrent weights, layer 0
R_WHH1 = R_WHH0 + HIDDEN         # (H, 4H)       recurrent weights, layer 1
R_WIH1 = R_WHH1 + HIDDEN         # (H, 4H)       input weights, layer 1
R_WL2H = R_WIH1 + HIDDEN         # (L, H)        latent -> hidden   (cols 0:H)
R_WH2O = R_WL2H + LATENT         # (H, OUT_PAD)  hidden -> output   (cols >= OUTPUT zero)
R_BL2H = R_WH2O + HIDDEN         # (1, H)
R_B0 = R_BL2H + 8                # (1, 4H)  combined b_ih+b_hh, layer 0
R_B1 = R_B0 + 8                  # (1, 4H)  combined b_ih+b_hh, layer 1
R_BH2O = R_B1 + 8                # (1, OUT_PAD)
ROWS_W = R_BH2O + 8              # rows padded to a multiple of 8


# ------------------------------ Pallas kernel ------------------------------
def _decoder_kernel(latent_ref, w_ref, out_ref, h_scr):
    f32 = jnp.float32
    H = HIDDEN
    B = latent_ref.shape[0]

    # ---- loop-invariant loads, hoisted out of the fully-unrolled time loop ----
    w_hh0 = w_ref[R_WHH0:R_WHH0 + H, :]              # (H, 4H) f32
    w_hh1 = w_ref[R_WHH1:R_WHH1 + H, :]              # (H, 4H) f32
    w_ih1 = w_ref[R_WIH1:R_WIH1 + H, :]              # (H, 4H) f32
    w_l2h = w_ref[R_WL2H:R_WL2H + LATENT, 0:H]       # (L, H)  f32
    w_h2o = w_ref[R_WH2O:R_WH2O + H, :]              # (H, OUT_PAD) f32, cols >= OUTPUT are 0
    b_l2h = w_ref[R_BL2H:R_BL2H + 1, 0:H]            # (1, H)
    # hoist bias broadcasts once (JAX does not CSE broadcast_in_dim per loop iter)
    b0 = jnp.broadcast_to(w_ref[R_B0:R_B0 + 1, :], (B, 4 * H))
    b1 = jnp.broadcast_to(w_ref[R_B1:R_B1 + 1, :], (B, 4 * H))
    b_h2o = w_ref[R_BH2O:R_BH2O + 1, :]              # (1, OUT_PAD)

    # latent -> hidden: initial hidden state shared by both LSTM layers
    h_state = jnp.dot(latent_ref[...], w_l2h, preferred_element_type=f32) + b_l2h
    h0, h1 = h_state, h_state
    c0 = jnp.zeros_like(h_state)
    c1 = jnp.zeros_like(h_state)

    for t in range(SEQ):           # short static trip count -> unrolled
        # ---- layer 0: input sequence is identically zero -> no W_ih_l0 term ----
        # Recurrent matmul depends only on h0(t-1); its chain overlaps layer-1's.
        # PyTorch gate order: i, f, g, o.  One full-width sigmoid + one tanh,
        # then slice, instead of 4 quarter-width transcendentals.
        g0 = jnp.dot(h0, w_hh0, preferred_element_type=f32) + b0        # (B, 4H)
        s0 = jax.nn.sigmoid(g0)
        t0 = jnp.tanh(g0)
        c0 = s0[:, H:2 * H] * c0 + s0[:, 0:H] * t0[:, 2 * H:3 * H]
        h0 = s0[:, 3 * H:4 * H] * jnp.tanh(c0)

        # ---- layer 1: recurrent term depends only on h1(t-1); input = h0(t) ----
        g1 = (jnp.dot(h1, w_hh1, preferred_element_type=f32) + b1
              + jnp.dot(h0, w_ih1, preferred_element_type=f32))         # (B, 4H)
        s1 = jax.nn.sigmoid(g1)
        t1 = jnp.tanh(g1)
        c1 = s1[:, H:2 * H] * c1 + s1[:, 0:H] * t1[:, 2 * H:3 * H]
        h1 = s1[:, 3 * H:4 * H] * jnp.tanh(c1)

        # per-step store at a static row offset (idle vst slot, overlaps compute)
        h_scr[t * B:(t + 1) * B, :] = h1

    # hoisted output projection: one matmul + one sigmoid + one lane-dense store
    h_all = h_scr[...]                                                  # (SEQ*B, H)
    y = jnp.dot(h_all, w_h2o, preferred_element_type=f32) + b_h2o       # (SEQ*B, OUT_PAD)
    out_ref[...] = jax.nn.sigmoid(y)


# --------------------------------- wrapper ---------------------------------
def act_decoder_forward(latent, w):
    """latent: (B, LATENT) f32; w: packed f32 weight slab -> (SEQ, B, OUTPUT) f32."""
    B = latent.shape[0]
    out2d = pl.pallas_call(
        _decoder_kernel,
        out_shape=jax.ShapeDtypeStruct((SEQ * B, OUT_PAD), jnp.float32),
        # single invocation (no grid): total live data ~100 KiB, far under VMEM
        # on every generation -> no VMEM-limit / tile tuning needed.
        in_specs=[pl.BlockSpec(memory_space=pltpu.MemorySpace.VMEM)] * 2,
        out_specs=pl.BlockSpec(memory_space=pltpu.MemorySpace.VMEM),
        scratch_shapes=[pltpu.VMEM((SEQ * B, HIDDEN), jnp.float32)],
    )(latent, w)
    # strip lane padding and restore (seq, batch, output) layout
    return out2d[:, :OUTPUT].reshape(SEQ, B, OUTPUT)


# --------------------------- deterministic params ---------------------------
def _xavier_uniform(key, out_dim, in_dim):
    a = math.sqrt(6.0 / (in_dim + out_dim))
    return jax.random.uniform(key, (out_dim, in_dim), jnp.float32, -a, a)


def init_params(key):
    keys = jax.random.split(key, 4 + 4 * DEPTH)
    p = {}

    # latent_to_hidden: xavier_uniform weight (H, L), default bias U(-1/sqrt(L), 1/sqrt(L))
    wl2h = _xavier_uniform(keys[0], HIDDEN, LATENT)
    bl2h = jax.random.uniform(keys[1], (HIDDEN,), jnp.float32,
                              -1.0 / math.sqrt(LATENT), 1.0 / math.sqrt(LATENT))
    p["wl2h_T"] = wl2h.T                       # (L, H)
    p["bl2h"] = bl2h

    # hidden_to_output: xavier_uniform weight (O, H), default bias
    wh2o = _xavier_uniform(keys[2], OUTPUT, HIDDEN)
    bh2o = jax.random.uniform(keys[3], (OUTPUT,), jnp.float32,
                              -1.0 / math.sqrt(HIDDEN), 1.0 / math.sqrt(HIDDEN))
    p["wh2o_T"] = wh2o.T                       # (H, O)
    p["bh2o"] = bh2o

    # LSTM layers: PyTorch default init U(-1/sqrt(H), 1/sqrt(H)) for all tensors.
    k_lim = 1.0 / math.sqrt(HIDDEN)
    for k in range(DEPTH):
        kk = keys[4 + 4 * k:4 + 4 * (k + 1)]
        in_dim = 1 if k == 0 else HIDDEN
        w_ih = jax.random.uniform(kk[0], (4 * HIDDEN, in_dim), jnp.float32, -k_lim, k_lim)
        w_hh = jax.random.uniform(kk[1], (4 * HIDDEN, HIDDEN), jnp.float32, -k_lim, k_lim)
        b_ih = jax.random.uniform(kk[2], (4 * HIDDEN,), jnp.float32, -k_lim, k_lim)
        b_hh = jax.random.uniform(kk[3], (4 * HIDDEN,), jnp.float32, -k_lim, k_lim)
        if k > 0:
            p[f"wih{k}_T"] = w_ih.T            # (H, 4H)
        # layer-0 input is identically zero -> W_ih_l0 contributes nothing, dropped.
        p[f"whh{k}_T"] = w_hh.T                # (H, 4H)
        p[f"b{k}"] = b_ih + b_hh               # (4H,)
    return p


def pack_params(p):
    """Pack raw params into one contiguous f32 slab -> 1 weight DMA."""
    H, L, O = HIDDEN, LATENT, OUTPUT
    w = jnp.zeros((ROWS_W, 4 * H), jnp.float32)
    w = w.at[R_WHH0:R_WHH0 + H, :].set(p["whh0_T"])
    w = w.at[R_WHH1:R_WHH1 + H, :].set(p["whh1_T"])
    w = w.at[R_WIH1:R_WIH1 + H, :].set(p["wih1_T"])
    w = w.at[R_WL2H:R_WL2H + L, 0:H].set(p["wl2h_T"])
    w = w.at[R_WH2O:R_WH2O + H, 0:O].set(p["wh2o_T"])   # cols O..OUT_PAD stay zero
    w = w.at[R_BL2H, 0:H].set(p["bl2h"])
    w = w.at[R_B0, :].set(p["b0"])
    w = w.at[R_B1, :].set(p["b1"])
    w = w.at[R_BH2O, 0:O].set(p["bh2o"])
    return w


# ------------------------------ pure-JAX reference ---------------------------
def reference_forward(latent, p):
    """Straightforward f32 stacked-LSTM decoder, same math as the kernel."""
    H = HIDDEN
    h_state = latent @ p["wl2h_T"] + p["bl2h"]
    hs = [h_state for _ in range(DEPTH)]
    cs = [jnp.zeros_like(h_state) for _ in range(DEPTH)]
    outs = []
    for _ in range(SEQ):
        x = None
        for k in range(DEPTH):
            gates = hs[k] @ p[f"whh{k}_T"] + p[f"b{k}"]
            if k > 0:
                gates = gates + x @ p[f"wih{k}_T"]
            i_g = jax.nn.sigmoid(gates[:, 0 * H:1 * H])
            f_g = jax.nn.sigmoid(gates[:, 1 * H:2 * H])
            g_g = jnp.tanh(gates[:, 2 * H:3 * H])
            o_g = jax.nn.sigmoid(gates[:, 3 * H:4 * H])
            cs[k] = f_g * cs[k] + i_g * g_g
            hs[k] = o_g * jnp.tanh(cs[k])
            x = hs[k]
        outs.append(jax.nn.sigmoid(hs[-1] @ p["wh2o_T"] + p["bh2o"]))
    return jnp.stack(outs, axis=0)


# ----------------------------------- main -----------------------------------
if __name__ == "__main__":
    key = jax.random.PRNGKey(0)
    k_param, k_latent = jax.random.split(key)
    params = init_params(k_param)
    latent = jax.random.normal(k_latent, (BATCH, LATENT), jnp.float32)
    w_slab = pack_params(params)

    out = act_decoder_forward(latent, w_slab)
    out = jax.block_until_ready(out)

    ref = reference_forward(latent, params)
    assert out.shape == (SEQ, BATCH, OUTPUT), out.shape
    max_err = float(jnp.max(jnp.abs(out - ref)))
    # Pure f32 both sides; only Pallas-vs-XLA transcendental ULP differences
    # compound over the 8-step recurrence (structural bugs give errors >> 1e-2).
    assert max_err < 1e-3, f"max err {max_err}"

    print("KERNEL_OK")
</pallas_src>

<mosaic_0001>
module attributes {stable_mosaic.version = 11 : i64} {
  func.func @_decoder_kernel(%arg0: memref<2x16xf32, #tpu.memory_space<vmem>>, %arg1: memref<176x128xf32, #tpu.memory_space<vmem>>, %arg2: memref<16x128xf32, #tpu.memory_space<vmem>>, %arg3: memref<16x32xf32, #tpu.memory_space<vmem>>) attributes {dimension_semantics = [], scalar_prefetch = 0 : i64, scratch_operands = 1 : i64, tpu.core_type = #tpu.core_type<tc>} {
    %c0 = arith.constant 0 : index
    %c0_0 = arith.constant 0 : index
    %0 = vector.load %arg1[%c0, %c0_0] : memref<176x128xf32, #tpu.memory_space<vmem>>, vector<32x128xf32>
    %c32 = arith.constant 32 : index
    %c0_1 = arith.constant 0 : index
    %1 = vector.load %arg1[%c32, %c0_1] : memref<176x128xf32, #tpu.memory_space<vmem>>, vector<32x128xf32>
    %c64 = arith.constant 64 : index
    %c0_2 = arith.constant 0 : index
    %2 = vector.load %arg1[%c64, %c0_2] : memref<176x128xf32, #tpu.memory_space<vmem>>, vector<32x128xf32>
    %c96 = arith.constant 96 : index
    %c0_3 = arith.constant 0 : index
    %3 = vector.load %arg1[%c96, %c0_3] : memref<176x128xf32, #tpu.memory_space<vmem>>, vector<16x32xf32>
    %c112 = arith.constant 112 : index
    %c0_4 = arith.constant 0 : index
    %4 = vector.load %arg1[%c112, %c0_4] : memref<176x128xf32, #tpu.memory_space<vmem>>, vector<32x128xf32>
    %c144 = arith.constant 144 : index
    %c0_5 = arith.constant 0 : index
    %5 = vector.load %arg1[%c144, %c0_5] : memref<176x128xf32, #tpu.memory_space<vmem>>, vector<1x32xf32>
    %c152 = arith.constant 152 : index
    %c0_6 = arith.constant 0 : index
    %6 = vector.load %arg1[%c152, %c0_6] : memref<176x128xf32, #tpu.memory_space<vmem>>, vector<1x128xf32>
    %7 = vector.shape_cast %6 : vector<1x128xf32> to vector<1x128xf32>
    %8 = vector.broadcast %7 : vector<1x128xf32> to vector<2x128xf32>
    %c160 = arith.constant 160 : index
    %c0_7 = arith.constant 0 : index
    %9 = vector.load %arg1[%c160, %c0_7] : memref<176x128xf32, #tpu.memory_space<vmem>>, vector<1x128xf32>
    %10 = vector.shape_cast %9 : vector<1x128xf32> to vector<1x128xf32>
    %11 = vector.broadcast %10 : vector<1x128xf32> to vector<2x128xf32>
    %c168 = arith.constant 168 : index
    %c0_8 = arith.constant 0 : index
    %12 = vector.load %arg1[%c168, %c0_8] : memref<176x128xf32, #tpu.memory_space<vmem>>, vector<1x128xf32>
    %c0_9 = arith.constant 0 : index
    %c0_10 = arith.constant 0 : index
    %13 = vector.load %arg0[%c0_9, %c0_10] : memref<2x16xf32, #tpu.memory_space<vmem>>, vector<2x16xf32>
    %cst = arith.constant dense<0.000000e+00> : vector<2x32xf32>
    %14 = tpu.matmul %13, %3, %cst {dimension_numbers = #tpu.dot_dimension_numbers<[1], [0], [0], [1], [0, 0, 1, 1], [], []>} : vector<2x16xf32>, vector<16x32xf32>, vector<2x32xf32> -> vector<2x32xf32>
    %15 = vector.broadcast %5 : vector<1x32xf32> to vector<2x32xf32>
    %16 = arith.addf %14, %15 : vector<2x32xf32>
    %cst_11 = arith.constant 0.000000e+00 : f32
    %17 = vector.broadcast %cst_11 : f32 to vector<2x32xf32>
    %cst_12 = arith.constant 0.000000e+00 : f32
    %18 = vector.broadcast %cst_12 : f32 to vector<2x32xf32>
    %cst_13 = arith.constant dense<0.000000e+00> : vector<2x128xf32>
    %19 = tpu.matmul %16, %0, %cst_13 {dimension_numbers = #tpu.dot_dimension_numbers<[1], [0], [0], [1], [0, 0, 1, 1], [], []>} : vector<2x32xf32>, vector<32x128xf32>, vector<2x128xf32> -> vector<2x128xf32>
    %20 = arith.addf %19, %8 : vector<2x128xf32>
    %21 = arith.negf %20 : vector<2x128xf32>
    %22 = math.exp %21 : vector<2x128xf32>
    %cst_14 = arith.constant 1.000000e+00 : f32
    %23 = vector.broadcast %cst_14 : f32 to vector<2x128xf32>
    %24 = arith.addf %23, %22 : vector<2x128xf32>
    %25 = arith.divf %23, %24 : vector<2x128xf32>
    %26 = math.tanh %20 : vector<2x128xf32>
    %27 = vector.extract_strided_slice %25 {offsets = [0, 32], sizes = [2, 32], strides = [1, 1]} : vector<2x128xf32> to vector<2x32xf32>
    %28 = arith.mulf %27, %17 : vector<2x32xf32>
    %29 = vector.extract_strided_slice %25 {offsets = [0, 0], sizes = [2, 32], strides = [1, 1]} : vector<2x128xf32> to vector<2x32xf32>
    %30 = vector.extract_strided_slice %26 {offsets = [0, 64], sizes = [2, 32], strides = [1, 1]} : vector<2x128xf32> to vector<2x32xf32>
    %31 = arith.mulf %29, %30 : vector<2x32xf32>
    %32 = arith.addf %28, %31 : vector<2x32xf32>
    %33 = vector.extract_strided_slice %25 {offsets = [0, 96], sizes = [2, 32], strides = [1, 1]} : vector<2x128xf32> to vector<2x32xf32>
    %34 = math.tanh %32 : vector<2x32xf32>
    %35 = arith.mulf %33, %34 : vector<2x32xf32>
    %cst_15 = arith.constant dense<0.000000e+00> : vector<2x128xf32>
    %36 = tpu.matmul %16, %1, %cst_15 {dimension_numbers = #tpu.dot_dimension_numbers<[1], [0], [0], [1], [0, 0, 1, 1], [], []>} : vector<2x32xf32>, vector<32x128xf32>, vector<2x128xf32> -> vector<2x128xf32>
    %37 = arith.addf %36, %11 : vector<2x128xf32>
    %cst_16 = arith.constant dense<0.000000e+00> : vector<2x128xf32>
    %38 = tpu.matmul %35, %2, %cst_16 {dimension_numbers = #tpu.dot_dimension_numbers<[1], [0], [0], [1], [0, 0, 1, 1], [], []>} : vector<2x32xf32>, vector<32x128xf32>, vector<2x128xf32> -> vector<2x128xf32>
    %39 = arith.addf %37, %38 : vector<2x128xf32>
    %40 = arith.negf %39 : vector<2x128xf32>
    %41 = math.exp %40 : vector<2x128xf32>
    %cst_17 = arith.constant 1.000000e+00 : f32
    %42 = vector.broadcast %cst_17 : f32 to vector<2x128xf32>
    %43 = arith.addf %42, %41 : vector<2x128xf32>
    %44 = arith.divf %42, %43 : vector<2x128xf32>
    %45 = math.tanh %39 : vector<2x128xf32>
    %46 = vector.extract_strided_slice %44 {offsets = [0, 32], sizes = [2, 32], strides = [1, 1]} : vector<2x128xf32> to vector<2x32xf32>
    %47 = arith.mulf %46, %18 : vector<2x32xf32>
    %48 = vector.extract_strided_slice %44 {offsets = [0, 0], sizes = [2, 32], strides = [1, 1]} : vector<2x128xf32> to vector<2x32xf32>
    %49 = vector.extract_strided_slice %45 {offsets = [0, 64], sizes = [2, 32], strides = [1, 1]} : vector<2x128xf32> to vector<2x32xf32>
    %50 = arith.mulf %48, %49 : vector<2x32xf32>
    %51 = arith.addf %47, %50 : vector<2x32xf32>
    %52 = vector.extract_strided_slice %44 {offsets = [0, 96], sizes = [2, 32], strides = [1, 1]} : vector<2x128xf32> to vector<2x32xf32>
    %53 = math.tanh %51 : vector<2x32xf32>
    %54 = arith.mulf %52, %53 : vector<2x32xf32>
    %c0_18 = arith.constant 0 : index
    %c0_19 = arith.constant 0 : index
    %55 = vector.load %arg3[%c0_18, %c0_19] : memref<16x32xf32, #tpu.memory_space<vmem>>, vector<2x32xf32>
    tpu.vector_store %arg3[%c0_18, %c0_19], %54 {strides = array<i32>} : memref<16x32xf32, #tpu.memory_space<vmem>>, vector<2x32xf32>,
    %cst_20 = arith.constant dense<0.000000e+00> : vector<2x128xf32>
    %56 = tpu.matmul %35, %0, %cst_20 {dimension_numbers = #tpu.dot_dimension_numbers<[1], [0], [0], [1], [0, 0, 1, 1], [], []>} : vector<2x32xf32>, vector<32x128xf32>, vector<2x128xf32> -> vector<2x128xf32>
    %57 = arith.addf %56, %8 : vector<2x128xf32>
    %58 = arith.negf %57 : vector<2x128xf32>
    %59 = math.exp %58 : vector<2x128xf32>
    %cst_21 = arith.constant 1.000000e+00 : f32
    %60 = vector.broadcast %cst_21 : f32 to vector<2x128xf32>
    %61 = arith.addf %60, %59 : vector<2x128xf32>
    %62 = arith.divf %60, %61 : vector<2x128xf32>
    %63 = math.tanh %57 : vector<2x128xf32>
    %64 = vector.extract_strided_slice %62 {offsets = [0, 32], sizes = [2, 32], strides = [1, 1]} : vector<2x128xf32> to vector<2x32xf32>
    %65 = arith.mulf %64, %32 : vector<2x32xf32>
    %66 = vector.extract_strided_slice %62 {offsets = [0, 0], sizes = [2, 32], strides = [1, 1]} : vector<2x128xf32> to vector<2x32xf32>
    %67 = vector.extract_strided_slice %63 {offsets = [0, 64], sizes = [2, 32], strides = [1, 1]} : vector<2x128xf32> to vector<2x32xf32>
    %68 = arith.mulf %66, %67 : vector<2x32xf32>
    %69 = arith.addf %65, %68 : vector<2x32xf32>
    %70 = vector.extract_strided_slice %62 {offsets = [0, 96], sizes = [2, 32], strides = [1, 1]} : vector<2x128xf32> to vector<2x32xf32>
    %71 = math.tanh %69 : vector<2x32xf32>
    %72 = arith.mulf %70, %71 : vector<2x32xf32>
    %cst_22 = arith.constant dense<0.000000e+00> : vector<2x128xf32>
    %73 = tpu.matmul %54, %1, %cst_22 {dimension_numbers = #tpu.dot_dimension_numbers<[1], [0], [0], [1], [0, 0, 1, 1], [], []>} : vector<2x32xf32>, vector<32x128xf32>, vector<2x128xf32> -> vector<2x128xf32>
    %74 = arith.addf %73, %11 : vector<2x128xf32>
    %cst_23 = arith.constant dense<0.000000e+00> : vector<2x128xf32>
    %75 = tpu.matmul %72, %2, %cst_23 {dimension_numbers = #tpu.dot_dimension_numbers<[1], [0], [0], [1], [0, 0, 1, 1], [], []>} : vector<2x32xf32>, vector<32x128xf32>, vector<2x128xf32> -> vector<2x128xf32>
    %76 = arith.addf %74, %75 : vector<2x128xf32>
    %77 = arith.negf %76 : vector<2x128xf32>
    %78 = math.exp %77 : vector<2x128xf32>
    %cst_24 = arith.constant 1.000000e+00 : f32
    %79 = vector.broadcast %cst_24 : f32 to vector<2x128xf32>
    %80 = arith.addf %79, %78 : vector<2x128xf32>
    %81 = arith.divf %79, %80 : vector<2x128xf32>
    %82 = math.tanh %76 : vector<2x128xf32>
    %83 = vector.extract_strided_slice %81 {offsets = [0, 32], sizes = [2, 32], strides = [1, 1]} : vector<2x128xf32> to vector<2x32xf32>
    %84 = arith.mulf %83, %51 : vector<2x32xf32>
    %85 = vector.extract_strided_slice %81 {offsets = [0, 0], sizes = [2, 32], strides = [1, 1]} : vector<2x128xf32> to vector<2x32xf32>
    %86 = vector.extract_strided_slice %82 {offsets = [0, 64], sizes = [2, 32], strides = [1, 1]} : vector<2x128xf32> to vector<2x32xf32>
    %87 = arith.mulf %85, %86 : vector<2x32xf32>
    %88 = arith.addf %84, %87 : vector<2x32xf32>
    %89 = vector.extract_strided_slice %81 {offsets = [0, 96], sizes = [2, 32], strides = [1, 1]} : vector<2x128xf32> to vector<2x32xf32>
    %90 = math.tanh %88 : vector<2x32xf32>
    %91 = arith.mulf %89, %90 : vector<2x32xf32>
    %c2 = arith.constant 2 : index
    %c0_25 = arith.constant 0 : index
    %92 = vector.load %arg3[%c2, %c0_25] : memref<16x32xf32, #tpu.memory_space<vmem>>, vector<2x32xf32>
    tpu.vector_store %arg3[%c2, %c0_25], %91 {strides = array<i32>} : memref<16x32xf32, #tpu.memory_space<vmem>>, vector<2x32xf32>,
    %cst_26 = arith.constant dense<0.000000e+00> : vector<2x128xf32>
    %93 = tpu.matmul %72, %0, %cst_26 {dimension_numbers = #tpu.dot_dimension_numbers<[1], [0], [0], [1], [0, 0, 1, 1], [], []>} : vector<2x32xf32>, vector<32x128xf32>, vector<2x128xf32> -> vector<2x128xf32>
    %94 = arith.addf %93, %8 : vector<2x128xf32>
    %95 = arith.negf %94 : vector<2x128xf32>
    %96 = math.exp %95 : vector<2x128xf32>
    %cst_27 = arith.constant 1.000000e+00 : f32
    %97 = vector.broadcast %cst_27 : f32 to vector<2x128xf32>
    %98 = arith.addf %97, %96 : vector<2x128xf32>
    %99 = arith.divf %97, %98 : vector<2x128xf32>
    %100 = math.tanh %94 : vector<2x128xf32>
    %101 = vector.extract_strided_slice %99 {offsets = [0, 32], sizes = [2, 32], strides = [1, 1]} : vector<2x128xf32> to vector<2x32xf32>
    %102 = arith.mulf %101, %69 : vector<2x32xf32>
    %103 = vector.extract_strided_slice %99 {offsets = [0, 0], sizes = [2, 32], strides = [1, 1]} : vector<2x128xf32> to vector<2x32xf32>
    %104 = vector.extract_strided_slice %100 {offsets = [0, 64], sizes = [2, 32], strides = [1, 1]} : vector<2x128xf32> to vector<2x32xf32>
    %105 = arith.mulf %103, %104 : vector<2x32xf32>
    %106 = arith.addf %102, %105 : vector<2x32xf32>
    %107 = vector.extract_strided_slice %99 {offsets = [0, 96], sizes = [2, 32], strides = [1, 1]} : vector<2x128xf32> to vector<2x32xf32>
    %108 = math.tanh %106 : vector<2x32xf32>
    %109 = arith.mulf %107, %108 : vector<2x32xf32>
    %cst_28 = arith.constant dense<0.000000e+00> : vector<2x128xf32>
    %110 = tpu.matmul %91, %1, %cst_28 {dimension_numbers = #tpu.dot_dimension_numbers<[1], [0], [0], [1], [0, 0, 1, 1], [], []>} : vector<2x32xf32>, vector<32x128xf32>, vector<2x128xf32> -> vector<2x128xf32>
    %111 = arith.addf %110, %11 : vector<2x128xf32>
    %cst_29 = arith.constant dense<0.000000e+00> : vector<2x128xf32>
    %112 = tpu.matmul %109, %2, %cst_29 {dimension_numbers = #tpu.dot_dimension_numbers<[1], [0], [0], [1], [0, 0, 1, 1], [], []>} : vector<2x32xf32>, vector<32x128xf32>, vector<2x128xf32> -> vector<2x128xf32>
    %113 = arith.addf %111, %112 : vector<2x128xf32>
    %114 = arith.negf %113 : vector<2x128xf32>
    %115 = math.exp %114 : vector<2x128xf32>
    %cst_30 = arith.constant 1.000000e+00 : f32
    %116 = vector.broadcast %cst_30 : f32 to vector<2x128xf32>
    %117 = arith.addf %116, %115 : vector<2x128xf32>
    %118 = arith.divf %116, %117 : vector<2x128xf32>
    %119 = math.tanh %113 : vector<2x128xf32>
    %120 = vector.extract_strided_slice %118 {offsets = [0, 32], sizes = [2, 32], strides = [1, 1]} : vector<2x128xf32> to vector<2x32xf32>
    %121 = arith.mulf %120, %88 : vector<2x32xf32>
    %122 = vector.extract_strided_slice %118 {offsets = [0, 0], sizes = [2, 32], strides = [1, 1]} : vector<2x128xf32> to vector<2x32xf32>
    %123 = vector.extract_strided_slice %119 {offsets = [0, 64], sizes = [2, 32], strides = [1, 1]} : vector<2x128xf32> to vector<2x32xf32>
    %124 = arith.mulf %122, %123 : vector<2x32xf32>
    %125 = arith.addf %121, %124 : vector<2x32xf32>
    %126 = vector.extract_strided_slice %118 {offsets = [0, 96], sizes = [2, 32], strides = [1, 1]} : vector<2x128xf32> to vector<2x32xf32>
    %127 = math.tanh %125 : vector<2x32xf32>
    %128 = arith.mulf %126, %127 : vector<2x32xf32>
    %c4 = arith.constant 4 : index
    %c0_31 = arith.constant 0 : index
    %129 = vector.load %arg3[%c4, %c0_31] : memref<16x32xf32, #tpu.memory_space<vmem>>, vector<2x32xf32>
    tpu.vector_store %arg3[%c4, %c0_31], %128 {strides = array<i32>} : memref<16x32xf32, #tpu.memory_space<vmem>>, vector<2x32xf32>,
    %cst_32 = arith.constant dense<0.000000e+00> : vector<2x128xf32>
    %130 = tpu.matmul %109, %0, %cst_32 {dimension_numbers = #tpu.dot_dimension_numbers<[1], [0], [0], [1], [0, 0, 1, 1], [], []>} : vector<2x32xf32>, vector<32x128xf32>, vector<2x128xf32> -> vector<2x128xf32>
    %131 = arith.addf %130, %8 : vector<2x128xf32>
    %132 = arith.negf %131 : vector<2x128xf32>
    %133 = math.exp %132 : vector<2x128xf32>
    %cst_33 = arith.constant 1.000000e+00 : f32
    %134 = vector.broadcast %cst_33 : f32 to vector<2x128xf32>
    %135 = arith.addf %134, %133 : vector<2x128xf32>
    %136 = arith.divf %134, %135 : vector<2x128xf32>
    %137 = math.tanh %131 : vector<2x128xf32>
    %138 = vector.extract_strided_slice %136 {offsets = [0, 32], sizes = [2, 32], strides = [1, 1]} : vector<2x128xf32> to vector<2x32xf32>
    %139 = arith.mulf %138, %106 : vector<2x32xf32>
    %140 = vector.extract_strided_slice %136 {offsets = [0, 0], sizes = [2, 32], strides = [1, 1]} : vector<2x128xf32> to vector<2x32xf32>
    %141 = vector.extract_strided_slice %137 {offsets = [0, 64], sizes = [2, 32], strides = [1, 1]} : vector<2x128xf32> to vector<2x32xf32>
    %142 = arith.mulf %140, %141 : vector<2x32xf32>
    %143 = arith.addf %139, %142 : vector<2x32xf32>
    %144 = vector.extract_strided_slice %136 {offsets = [0, 96], sizes = [2, 32], strides = [1, 1]} : vector<2x128xf32> to vector<2x32xf32>
    %145 = math.tanh %143 : vector<2x32xf32>
    %146 = arith.mulf %144, %145 : vector<2x32xf32>
    %cst_34 = arith.constant dense<0.000000e+00> : vector<2x128xf32>
    %147 = tpu.matmul %128, %1, %cst_34 {dimension_numbers = #tpu.dot_dimension_numbers<[1], [0], [0], [1], [0, 0, 1, 1], [], []>} : vector<2x32xf32>, vector<32x128xf32>, vector<2x128xf32> -> vector<2x128xf32>
    %148 = arith.addf %147, %11 : vector<2x128xf32>
    %cst_35 = arith.constant dense<0.000000e+00> : vector<2x128xf32>
    %149 = tpu.matmul %146, %2, %cst_35 {dimension_numbers = #tpu.dot_dimension_numbers<[1], [0], [0], [1], [0, 0, 1, 1], [], []>} : vector<2x32xf32>, vector<32x128xf32>, vector<2x128xf32> -> vector<2x128xf32>
    %150 = arith.addf %148, %149 : vector<2x128xf32>
    %151 = arith.negf %150 : vector<2x128xf32>
    %152 = math.exp %151 : vector<2x128xf32>
    %cst_36 = arith.constant 1.000000e+00 : f32
    %153 = vector.broadcast %cst_36 : f32 to vector<2x128xf32>
    %154 = arith.addf %153, %152 : vector<2x128xf32>
    %155 = arith.divf %153, %154 : vector<2x128xf32>
    %156 = math.tanh %150 : vector<2x128xf32>
    %157 = vector.extract_strided_slice %155 {offsets = [0, 32], sizes = [2, 32], strides = [1, 1]} : vector<2x128xf32> to vector<2x32xf32>
    %158 = arith.mulf %157, %125 : vector<2x32xf32>
    %159 = vector.extract_strided_slice %155 {offsets = [0, 0], sizes = [2, 32], strides = [1, 1]} : vector<2x128xf32> to vector<2x32xf32>
    %160 = vector.extract_strided_slice %156 {offsets = [0, 64], sizes = [2, 32], strides = [1, 1]} : vector<2x128xf32> to vector<2x32xf32>
    %161 = arith.mulf %159, %160 : vector<2x32xf32>
    %162 = arith.addf %158, %161 : vector<2x32xf32>
    %163 = vector.extract_strided_slice %155 {offsets = [0, 96], sizes = [2, 32], strides = [1, 1]} : vector<2x128xf32> to vector<2x32xf32>
    %164 = math.tanh %162 : vector<2x32xf32>
    %165 = arith.mulf %163, %164 : vector<2x32xf32>
    %c6 = arith.constant 6 : index
    %c0_37 = arith.constant 0 : index
    %166 = vector.load %arg3[%c6, %c0_37] : memref<16x32xf32, #tpu.memory_space<vmem>>, vector<2x32xf32>
    tpu.vector_store %arg3[%c6, %c0_37], %165 {strides = array<i32>} : memref<16x32xf32, #tpu.memory_space<vmem>>, vector<2x32xf32>,
    %cst_38 = arith.constant dense<0.000000e+00> : vector<2x128xf32>
    %167 = tpu.matmul %146, %0, %cst_38 {dimension_numbers = #tpu.dot_dimension_numbers<[1], [0], [0], [1], [0, 0, 1, 1], [], []>} : vector<2x32xf32>, vector<32x128xf32>, vector<2x128xf32> -> vector<2x128xf32>
    %168 = arith.addf %167, %8 : vector<2x128xf32>
    %169 = arith.negf %168 : vector<2x128xf32>
    %170 = math.exp %169 : vector<2x128xf32>
    %cst_39 = arith.constant 1.000000e+00 : f32
    %171 = vector.broadcast %cst_39 : f32 to vector<2x128xf32>
    %172 = arith.addf %171, %170 : vector<2x128xf32>
    %173 = arith.divf %171, %172 : vector<2x128xf32>
    %174 = math.tanh %168 : vector<2x128xf32>
    %175 = vector.extract_strided_slice %173 {offsets = [0, 32], sizes = [2, 32], strides = [1, 1]} : vector<2x128xf32> to vector<2x32xf32>
    %176 = arith.mulf %175, %143 : vector<2x32xf32>
    %177 = vector.extract_strided_slice %173 {offsets = [0, 0], sizes = [2, 32], strides = [1, 1]} : vector<2x128xf32> to vector<2x32xf32>
    %178 = vector.extract_strided_slice %174 {offsets = [0, 64], sizes = [2, 32], strides = [1, 1]} : vector<2x128xf32> to vector<2x32xf32>
    %179 = arith.mulf %177, %178 : vector<2x32xf32>
    %180 = arith.addf %176, %179 : vector<2x32xf32>
    %181 = vector.extract_strided_slice %173 {offsets = [0, 96], sizes = [2, 32], strides = [1, 1]} : vector<2x128xf32> to vector<2x32xf32>
    %182 = math.tanh %180 : vector<2x32xf32>
    %183 = arith.mulf %181, %182 : vector<2x32xf32>
    %cst_40 = arith.constant dense<0.000000e+00> : vector<2x128xf32>
    %184 = tpu.matmul %165, %1, %cst_40 {dimension_numbers = #tpu.dot_dimension_numbers<[1], [0], [0], [1], [0, 0, 1, 1], [], []>} : vector<2x32xf32>, vector<32x128xf32>, vector<2x128xf32> -> vector<2x128xf32>
    %185 = arith.addf %184, %11 : vector<2x128xf32>
    %cst_41 = arith.constant dense<0.000000e+00> : vector<2x128xf32>
    %186 = tpu.matmul %183, %2, %cst_41 {dimension_numbers = #tpu.dot_dimension_numbers<[1], [0], [0], [1], [0, 0, 1, 1], [], []>} : vector<2x32xf32>, vector<32x128xf32>, vector<2x128xf32> -> vector<2x128xf32>
    %187 = arith.addf %185, %186 : vector<2x128xf32>
    %188 = arith.negf %187 : vector<2x128xf32>
    %189 = math.exp %188 : vector<2x128xf32>
    %cst_42 = arith.constant 1.000000e+00 : f32
    %190 = vector.broadcast %cst_42 : f32 to vector<2x128xf32>
    %191 = arith.addf %190, %189 : vector<2x128xf32>
    %192 = arith.divf %190, %191 : vector<2x128xf32>
    %193 = math.tanh %187 : vector<2x128xf32>
    %194 = vector.extract_strided_slice %192 {offsets = [0, 32], sizes = [2, 32], strides = [1, 1]} : vector<2x128xf32> to vector<2x32xf32>
    %195 = arith.mulf %194, %162 : vector<2x32xf32>
    %196 = vector.extract_strided_slice %192 {offsets = [0, 0], sizes = [2, 32], strides = [1, 1]} : vector<2x128xf32> to vector<2x32xf32>
    %197 = vector.extract_strided_slice %193 {offsets = [0, 64], sizes = [2, 32], strides = [1, 1]} : vector<2x128xf32> to vector<2x32xf32>
    %198 = arith.mulf %196, %197 : vector<2x32xf32>
    %199 = arith.addf %195, %198 : vector<2x32xf32>
    %200 = vector.extract_strided_slice %192 {offsets = [0, 96], sizes = [2, 32], strides = [1, 1]} : vector<2x128xf32> to vector<2x32xf32>
    %201 = math.tanh %199 : vector<2x32xf32>
    %202 = arith.mulf %200, %201 : vector<2x32xf32>
    %c8 = arith.constant 8 : index
    %c0_43 = arith.constant 0 : index
    %203 = vector.load %arg3[%c8, %c0_43] : memref<16x32xf32, #tpu.memory_space<vmem>>, vector<2x32xf32>
    tpu.vector_store %arg3[%c8, %c0_43], %202 {strides = array<i32>} : memref<16x32xf32, #tpu.memory_space<vmem>>, vector<2x32xf32>,
    %cst_44 = arith.constant dense<0.000000e+00> : vector<2x128xf32>
    %204 = tpu.matmul %183, %0, %cst_44 {dimension_numbers = #tpu.dot_dimension_numbers<[1], [0], [0], [1], [0, 0, 1, 1], [], []>} : vector<2x32xf32>, vector<32x128xf32>, vector<2x128xf32> -> vector<2x128xf32>
    %205 = arith.addf %204, %8 : vector<2x128xf32>
    %206 = arith.negf %205 : vector<2x128xf32>
    %207 = math.exp %206 : vector<2x128xf32>
    %cst_45 = arith.constant 1.000000e+00 : f32
    %208 = vector.broadcast %cst_45 : f32 to vector<2x128xf32>
    %209 = arith.addf %208, %207 : vector<2x128xf32>
    %210 = arith.divf %208, %209 : vector<2x128xf32>
    %211 = math.tanh %205 : vector<2x128xf32>
    %212 = vector.extract_strided_slice %210 {offsets = [0, 32], sizes = [2, 32], strides = [1, 1]} : vector<2x128xf32> to vector<2x32xf32>
    %213 = arith.mulf %212, %180 : vector<2x32xf32>
    %214 = vector.extract_strided_slice %210 {offsets = [0, 0], sizes = [2, 32], strides = [1, 1]} : vector<2x128xf32> to vector<2x32xf32>
    %215 = vector.extract_strided_slice %211 {offsets = [0, 64], sizes = [2, 32], strides = [1, 1]} : vector<2x128xf32> to vector<2x32xf32>
    %216 = arith.mulf %214, %215 : vector<2x32xf32>
    %217 = arith.addf %213, %216 : vector<2x32xf32>
    %218 = vector.extract_strided_slice %210 {offsets = [0, 96], sizes = [2, 32], strides = [1, 1]} : vector<2x128xf32> to vector<2x32xf32>
    %219 = math.tanh %217 : vector<2x32xf32>
    %220 = arith.mulf %218, %219 : vector<2x32xf32>
    %cst_46 = arith.constant dense<0.000000e+00> : vector<2x128xf32>
    %221 = tpu.matmul %202, %1, %cst_46 {dimension_numbers = #tpu.dot_dimension_numbers<[1], [0], [0], [1], [0, 0, 1, 1], [], []>} : vector<2x32xf32>, vector<32x128xf32>, vector<2x128xf32> -> vector<2x128xf32>
    %222 = arith.addf %221, %11 : vector<2x128xf32>
    %cst_47 = arith.constant dense<0.000000e+00> : vector<2x128xf32>
    %223 = tpu.matmul %220, %2, %cst_47 {dimension_numbers = #tpu.dot_dimension_numbers<[1], [0], [0], [1], [0, 0, 1, 1], [], []>} : vector<2x32xf32>, vector<32x128xf32>, vector<2x128xf32> -> vector<2x128xf32>
    %224 = arith.addf %222, %223 : vector<2x128xf32>
    %225 = arith.negf %224 : vector<2x128xf32>
    %226 = math.exp %225 : vector<2x128xf32>
    %cst_48 = arith.constant 1.000000e+00 : f32
    %227 = vector.broadcast %cst_48 : f32 to vector<2x128xf32>
    %228 = arith.addf %227, %226 : vector<2x128xf32>
    %229 = arith.divf %227, %228 : vector<2x128xf32>
    %230 = math.tanh %224 : vector<2x128xf32>
    %231 = vector.extract_strided_slice %229 {offsets = [0, 32], sizes = [2, 32], strides = [1, 1]} : vector<2x128xf32> to vector<2x32xf32>
    %232 = arith.mulf %231, %199 : vector<2x32xf32>
    %233 = vector.extract_strided_slice %229 {offsets = [0, 0], sizes = [2, 32], strides = [1, 1]} : vector<2x128xf32> to vector<2x32xf32>
    %234 = vector.extract_strided_slice %230 {offsets = [0, 64], sizes = [2, 32], strides = [1, 1]} : vector<2x128xf32> to vector<2x32xf32>
    %235 = arith.mulf %233, %234 : vector<2x32xf32>
    %236 = arith.addf %232, %235 : vector<2x32xf32>
    %237 = vector.extract_strided_slice %229 {offsets = [0, 96], sizes = [2, 32], strides = [1, 1]} : vector<2x128xf32> to vector<2x32xf32>
    %238 = math.tanh %236 : vector<2x32xf32>
    %239 = arith.mulf %237, %238 : vector<2x32xf32>
    %c10 = arith.constant 10 : index
    %c0_49 = arith.constant 0 : index
    %240 = vector.load %arg3[%c10, %c0_49] : memref<16x32xf32, #tpu.memory_space<vmem>>, vector<2x32xf32>
    tpu.vector_store %arg3[%c10, %c0_49], %239 {strides = array<i32>} : memref<16x32xf32, #tpu.memory_space<vmem>>, vector<2x32xf32>,
    %cst_50 = arith.constant dense<0.000000e+00> : vector<2x128xf32>
    %241 = tpu.matmul %220, %0, %cst_50 {dimension_numbers = #tpu.dot_dimension_numbers<[1], [0], [0], [1], [0, 0, 1, 1], [], []>} : vector<2x32xf32>, vector<32x128xf32>, vector<2x128xf32> -> vector<2x128xf32>
    %242 = arith.addf %241, %8 : vector<2x128xf32>
    %243 = arith.negf %242 : vector<2x128xf32>
    %244 = math.exp %243 : vector<2x128xf32>
    %cst_51 = arith.constant 1.000000e+00 : f32
    %245 = vector.broadcast %cst_51 : f32 to vector<2x128xf32>
    %246 = arith.addf %245, %244 : vector<2x128xf32>
    %247 = arith.divf %245, %246 : vector<2x128xf32>
    %248 = math.tanh %242 : vector<2x128xf32>
    %249 = vector.extract_strided_slice %247 {offsets = [0, 32], sizes = [2, 32], strides = [1, 1]} : vector<2x128xf32> to vector<2x32xf32>
    %250 = arith.mulf %249, %217 : vector<2x32xf32>
    %251 = vector.extract_strided_slice %247 {offsets = [0, 0], sizes = [2, 32], strides = [1, 1]} : vector<2x128xf32> to vector<2x32xf32>
    %252 = vector.extract_strided_slice %248 {offsets = [0, 64], sizes = [2, 32], strides = [1, 1]} : vector<2x128xf32> to vector<2x32xf32>
    %253 = arith.mulf %251, %252 : vector<2x32xf32>
    %254 = arith.addf %250, %253 : vector<2x32xf32>
    %255 = vector.extract_strided_slice %247 {offsets = [0, 96], sizes = [2, 32], strides = [1, 1]} : vector<2x128xf32> to vector<2x32xf32>
    %256 = math.tanh %254 : vector<2x32xf32>
    %257 = arith.mulf %255, %256 : vector<2x32xf32>
    %cst_52 = arith.constant dense<0.000000e+00> : vector<2x128xf32>
    %258 = tpu.matmul %239, %1, %cst_52 {dimension_numbers = #tpu.dot_dimension_numbers<[1], [0], [0], [1], [0, 0, 1, 1], [], []>} : vector<2x32xf32>, vector<32x128xf32>, vector<2x128xf32> -> vector<2x128xf32>
    %259 = arith.addf %258, %11 : vector<2x128xf32>
    %cst_53 = arith.constant dense<0.000000e+00> : vector<2x128xf32>
    %260 = tpu.matmul %257, %2, %cst_53 {dimension_numbers = #tpu.dot_dimension_numbers<[1], [0], [0], [1], [0, 0, 1, 1], [], []>} : vector<2x32xf32>, vector<32x128xf32>, vector<2x128xf32> -> vector<2x128xf32>
    %261 = arith.addf %259, %260 : vector<2x128xf32>
    %262 = arith.negf %261 : vector<2x128xf32>
    %263 = math.exp %262 : vector<2x128xf32>
    %cst_54 = arith.constant 1.000000e+00 : f32
    %264 = vector.broadcast %cst_54 : f32 to vector<2x128xf32>
    %265 = arith.addf %264, %263 : vector<2x128xf32>
    %266 = arith.divf %264, %265 : vector<2x128xf32>
    %267 = math.tanh %261 : vector<2x128xf32>
    %268 = vector.extract_strided_slice %266 {offsets = [0, 32], sizes = [2, 32], strides = [1, 1]} : vector<2x128xf32> to vector<2x32xf32>
    %269 = arith.mulf %268, %236 : vector<2x32xf32>
    %270 = vector.extract_strided_slice %266 {offsets = [0, 0], sizes = [2, 32], strides = [1, 1]} : vector<2x128xf32> to vector<2x32xf32>
    %271 = vector.extract_strided_slice %267 {offsets = [0, 64], sizes = [2, 32], strides = [1, 1]} : vector<2x128xf32> to vector<2x32xf32>
    %272 = arith.mulf %270, %271 : vector<2x32xf32>
    %273 = arith.addf %269, %272 : vector<2x32xf32>
    %274 = vector.extract_strided_slice %266 {offsets = [0, 96], sizes = [2, 32], strides = [1, 1]} : vector<2x128xf32> to vector<2x32xf32>
    %275 = math.tanh %273 : vector<2x32xf32>
    %276 = arith.mulf %274, %275 : vector<2x32xf32>
    %c12 = arith.constant 12 : index
    %c0_55 = arith.constant 0 : index
    %277 = vector.load %arg3[%c12, %c0_55] : memref<16x32xf32, #tpu.memory_space<vmem>>, vector<2x32xf32>
    tpu.vector_store %arg3[%c12, %c0_55], %276 {strides = array<i32>} : memref<16x32xf32, #tpu.memory_space<vmem>>, vector<2x32xf32>,
    %cst_56 = arith.constant dense<0.000000e+00> : vector<2x128xf32>
    %278 = tpu.matmul %257, %0, %cst_56 {dimension_numbers = #tpu.dot_dimension_numbers<[1], [0], [0], [1], [0, 0, 1, 1], [], []>} : vector<2x32xf32>, vector<32x128xf32>, vector<2x128xf32> -> vector<2x128xf32>
    %279 = arith.addf %278, %8 : vector<2x128xf32>
    %280 = arith.negf %279 : vector<2x128xf32>
    %281 = math.exp %280 : vector<2x128xf32>
    %cst_57 = arith.constant 1.000000e+00 : f32
    %282 = vector.broadcast %cst_57 : f32 to vector<2x128xf32>
    %283 = arith.addf %282, %281 : vector<2x128xf32>
    %284 = arith.divf %282, %283 : vector<2x128xf32>
    %285 = math.tanh %279 : vector<2x128xf32>
    %286 = vector.extract_strided_slice %284 {offsets = [0, 32], sizes = [2, 32], strides = [1, 1]} : vector<2x128xf32> to vector<2x32xf32>
    %287 = arith.mulf %286, %254 : vector<2x32xf32>
    %288 = vector.extract_strided_slice %284 {offsets = [0, 0], sizes = [2, 32], strides = [1, 1]} : vector<2x128xf32> to vector<2x32xf32>
    %289 = vector.extract_strided_slice %285 {offsets = [0, 64], sizes = [2, 32], strides = [1, 1]} : vector<2x128xf32> to vector<2x32xf32>
    %290 = arith.mulf %288, %289 : vector<2x32xf32>
    %291 = arith.addf %287, %290 : vector<2x32xf32>
    %292 = vector.extract_strided_slice %284 {offsets = [0, 96], sizes = [2, 32], strides = [1, 1]} : vector<2x128xf32> to vector<2x32xf32>
    %293 = math.tanh %291 : vector<2x32xf32>
    %294 = arith.mulf %292, %293 : vector<2x32xf32>
    %cst_58 = arith.constant dense<0.000000e+00> : vector<2x128xf32>
    %295 = tpu.matmul %276, %1, %cst_58 {dimension_numbers = #tpu.dot_dimension_numbers<[1], [0], [0], [1], [0, 0, 1, 1], [], []>} : vector<2x32xf32>, vector<32x128xf32>, vector<2x128xf32> -> vector<2x128xf32>
    %296 = arith.addf %295, %11 : vector<2x128xf32>
    %cst_59 = arith.constant dense<0.000000e+00> : vector<2x128xf32>
    %297 = tpu.matmul %294, %2, %cst_59 {dimension_numbers = #tpu.dot_dimension_numbers<[1], [0], [0], [1], [0, 0, 1, 1], [], []>} : vector<2x32xf32>, vector<32x128xf32>, vector<2x128xf32> -> vector<2x128xf32>
    %298 = arith.addf %296, %297 : vector<2x128xf32>
    %299 = arith.negf %298 : vector<2x128xf32>
    %300 = math.exp %299 : vector<2x128xf32>
    %cst_60 = arith.constant 1.000000e+00 : f32
    %301 = vector.broadcast %cst_60 : f32 to vector<2x128xf32>
    %302 = arith.addf %301, %300 : vector<2x128xf32>
    %303 = arith.divf %301, %302 : vector<2x128xf32>
    %304 = math.tanh %298 : vector<2x128xf32>
    %305 = vector.extract_strided_slice %303 {offsets = [0, 32], sizes = [2, 32], strides = [1, 1]} : vector<2x128xf32> to vector<2x32xf32>
    %306 = arith.mulf %305, %273 : vector<2x32xf32>
    %307 = vector.extract_strided_slice %303 {offsets = [0, 0], sizes = [2, 32], strides = [1, 1]} : vector<2x128xf32> to vector<2x32xf32>
    %308 = vector.extract_strided_slice %304 {offsets = [0, 64], sizes = [2, 32], strides = [1, 1]} : vector<2x128xf32> to vector<2x32xf32>
    %309 = arith.mulf %307, %308 : vector<2x32xf32>
    %310 = arith.addf %306, %309 : vector<2x32xf32>
    %311 = vector.extract_strided_slice %303 {offsets = [0, 96], sizes = [2, 32], strides = [1, 1]} : vector<2x128xf32> to vector<2x32xf32>
    %312 = math.tanh %310 : vector<2x32xf32>
    %313 = arith.mulf %311, %312 : vector<2x32xf32>
    %c14 = arith.constant 14 : index
    %c0_61 = arith.constant 0 : index
    %314 = vector.load %arg3[%c14, %c0_61] : memref<16x32xf32, #tpu.memory_space<vmem>>, vector<2x32xf32>
    tpu.vector_store %arg3[%c14, %c0_61], %313 {strides = array<i32>} : memref<16x32xf32, #tpu.memory_space<vmem>>, vector<2x32xf32>,
    %c0_62 = arith.constant 0 : index
    %c0_63 = arith.constant 0 : index
    %315 = vector.load %arg3[%c0_62, %c0_63] : memref<16x32xf32, #tpu.memory_space<vmem>>, vector<16x32xf32>
    %cst_64 = arith.constant dense<0.000000e+00> : vector<16x128xf32>
    %316 = tpu.matmul %315, %4, %cst_64 {dimension_numbers = #tpu.dot_dimension_numbers<[1], [0], [0], [1], [0, 0, 1, 1], [], []>} : vector<16x32xf32>, vector<32x128xf32>, vector<16x128xf32> -> vector<16x128xf32>
    %317 = vector.broadcast %12 : vector<1x128xf32> to vector<16x128xf32>
    %318 = arith.addf %316, %317 : vector<16x128xf32>
    %319 = arith.negf %318 : vector<16x128xf32>
    %320 = math.exp %319 : vector<16x128xf32>
    %cst_65 = arith.constant 1.000000e+00 : f32
    %321 = vector.broadcast %cst_65 : f32 to vector<16x128xf32>
    %322 = arith.addf %321, %320 : vector<16x128xf32>
    %323 = arith.divf %321, %322 : vector<16x128xf32>
    %c0_66 = arith.constant 0 : index
    %c0_67 = arith.constant 0 : index
    %324 = vector.load %arg2[%c0_66, %c0_67] : memref<16x128xf32, #tpu.memory_space<vmem>>, vector<16x128xf32>
    tpu.vector_store %arg2[%c0_66, %c0_67], %323 {strides = array<i32>} : memref<16x128xf32, #tpu.memory_space<vmem>>, vector<16x128xf32>,
    return
  }
}

</mosaic_0001>

<llo_original>
// kernel: tpu_custom_call.1
$region0: #{tpu_custom_call.1}
  #allocation0 [shape = 'u32[]', space=smem, size = 0x4, offset = 0x4, fixed_abs, tag = 'smem constant byte address 0x4 - core index']
  #allocation1 [shape = 'u32[144,128]{1,0:T(1,128)}', space=vmem, size = 0x12000, scoped, tag = 'internal scratch']
  #allocation2 [shape = 'f32[16,32]{1,0:T(8,128)}', space=vmem, size = 0x2000, scoped, tag = 'scratch operand']
  %s0 = inlined_call_operand.hbm [shape: f32[2,16], index: 0, kind: input, shape index: {}]
  %s1 = inlined_call_operand.hbm [shape: f32[176,128], index: 1, kind: input, shape index: {}]
  %s2 = inlined_call_operand.hbm [shape: f32[16,128], index: 2, kind: output, shape index: {}]
  %s3 = sld [smem:[#allocation0]]
  $region26: #{tpu_custom_call.1} parent=0
    _
  %s5 = ssub.s32 1, %s3
  %s6 = scalar_select 0, %s5, %s3
  $region1: #{tpu_custom_call.1} parent=0
    #allocation3 [shape = 'u8[1024]{0}', space=vmem, size = 0x400, scoped, tag = 'input window, operand 0, single buffered']
    #allocation4 [shape = 's32[1]{0}', space=sflag, size = 0x4, scoped, tag = 'scoped memory for tpu_custom_call.1']
    #allocation5 [shape = 's32[1]{0}', space=sflag, size = 0x4, scoped, tag = 'scoped memory for tpu_custom_call.1']
    #allocation6 [shape = 'u8[90112]{0}', space=vmem, size = 0x16000, scoped, tag = 'input window, operand 1, single buffered']
    #allocation7 [shape = 's32[1]{0}', space=sflag, size = 0x4, scoped, tag = 'scoped memory for tpu_custom_call.1']
    #allocation8 [shape = 'u8[8192]{0}', space=vmem, size = 0x2000, scoped, tag = 'output window, operand 0, single buffered']
    %7 = vsyncpa [#allocation4], 0
    %8 = vsyncpa [#allocation7], 0
    %9 = vsyncpa [#allocation5], 0
    // Predicated region
    $region2: #{tpu_custom_call.1} parent=1 // pred_check
      _
    $region3: #{tpu_custom_call.1} parent=1 // pred_check_branch
      %11 = sbr.rel (0) target = $region5
    $region4: #{tpu_custom_call.1} parent=1 // pred_region
      %s13 = ssub.s32 32, 32
      %14 = vsyncadd [#allocation4], %s13
      %s16 = sshll.u32 [#allocation3], 4
      %s17 = int_to_ptr.vmem [resolvable:$true] %s16
      %19 = dma.hbm_to_vmem [thread:$0]  %s0, 32, %s17, [#allocation4]
    $region5: #{tpu_custom_call.1} parent=1 // pred_fallthru
      _
    // Predicated region
    $region6: #{tpu_custom_call.1} parent=1 // pred_check
      _
    $region7: #{tpu_custom_call.1} parent=1 // pred_check_branch
      %21 = sbr.rel (0) target = $region9
    $region8: #{tpu_custom_call.1} parent=1 // pred_region
      %s23 = ssub.s32 2816, 2816
      %24 = vsyncadd [#allocation7], %s23
      %s25 = sshll.u32 [#allocation6], 4
      %s26 = int_to_ptr.vmem [resolvable:$true] %s25
      %31 = dma.hbm_to_vmem [thread:$0]  %s1, 2816, %s26, [#allocation7], 128, 128, 8
    $region9: #{tpu_custom_call.1} parent=1 // pred_fallthru
      _
    // Predicated region
    $region10: #{tpu_custom_call.1} parent=1 // pred_check
      _
    $region11: #{tpu_custom_call.1} parent=1 // pred_check_branch
      %33 = sbr.rel (0) target = $region13
    $region12: #{tpu_custom_call.1} parent=1 // pred_region
      %34 = dma.done [#allocation4], 32
    $region13: #{tpu_custom_call.1} parent=1 // pred_fallthru
      _
    // Predicated region
    $region14: #{tpu_custom_call.1} parent=1 // pred_check
      _
    $region15: #{tpu_custom_call.1} parent=1 // pred_check_branch
      %36 = sbr.rel (0) target = $region17
    $region16: #{tpu_custom_call.1} parent=1 // pred_region
      %37 = dma.done [#allocation7], 2816
    $region17: #{tpu_custom_call.1} parent=1 // pred_fallthru
      _
    %v38 = vld [vmem:[#allocation6] sm:$0xff]
    %v39 = vld [vmem:[#allocation6 + $0x8] sm:$0xff]
    %v40 = vld [vmem:[#allocation6 + $0x10] sm:$0xff]
    %v41 = vld [vmem:[#allocation6 + $0x18] sm:$0xff]
    %v42 = vld [vmem:[#allocation6 + $0x20] sm:$0xff]
    %v43 = vld [vmem:[#allocation6 + $0x28] sm:$0xff]
    %v44 = vld [vmem:[#allocation6 + $0x30] sm:$0xff]
    %v45 = vld [vmem:[#allocation6 + $0x38] sm:$0xff]
    %v46 = vld [vmem:[#allocation6 + $0x40] sm:$0xff]
    %v47 = vld [vmem:[#allocation6 + $0x48] sm:$0xff]
    %v48 = vld [vmem:[#allocation6 + $0x50] sm:$0xff]
    %v49 = vld [vmem:[#allocation6 + $0x58] sm:$0xff]
    %v50 = vld [vmem:[#allocation6 + $0x60] sm:$0xff]
    %v51 = vld [vmem:[#allocation6 + $0x68] sm:$0xff]
    %v52 = vld [vmem:[#allocation6 + $0x70] sm:$0xff]
    %v53 = vld [vmem:[#allocation6 + $0x78] sm:$0xff]
    %v54 = vld [vmem:[#allocation6 + $0x80] sm:$0xff]
    %v55 = vld [vmem:[#allocation6 + $0x88] sm:$0xff]
    %v56 = vld [vmem:[#allocation6 + $0x90] sm:$0x1]
    %v57 = vld [vmem:[#allocation6 + $0x98] sm:$0x1]
    %v58 = vlaneseq
    %v59 = vshrl.u32 %v58, 7
    %v60 = vsub.s32 0, %v59
    %v61 = vrot.slane %v57, %v60
    %v62 = vld [vmem:[#allocation6 + $0xa0] sm:$0x1]
    %v63 = vlaneseq
    %v64 = vshrl.u32 %v63, 7
    %v65 = vsub.s32 0, %v64
    %v66 = vrot.slane %v62, %v65
    %v67 = vld [vmem:[#allocation6 + $0xa8] sm:$0x1]
    %v68 = vld [vmem:[#allocation3] sm:$0x3]
    %v69 = vlaneseq
    %v70 = vshrl.u32 %v69, 7
    %v71 = vsub.s32 0, %v70
    %v72 = vrot.slane %v56, %v71
    %vm73 = vcmask 130048
    %v75 = vsel %vm73, %v68, 0
    %77 = vmatprep.subr.mxu0 0.0
    %78 = vmatpush1.msra.mxu0 0.0
    %79 = vmatprep.subr.mxu0 0.0
    %80 = vmatpush1.msra.mxu0 0.0
    %81 = vmatprep.subr.mxu0 0.0
    %82 = vmatpush1.msra.mxu0 0.0
    %83 = vmatprep.subr.mxu0 0.0
    %84 = vmatpush1.msra.mxu0 0.0
    %85 = vmatprep.subr.mxu0 0.0
    %86 = vmatpush1.msra.mxu0 0.0
    %87 = vmatprep.subr.mxu0 0.0
    %88 = vmatpush1.msra.mxu0 0.0
    %89 = vmatprep.subr.mxu0 0.0
    %90 = vmatpush1.msra.mxu0 0.0
    %91 = vmatprep.subr.mxu0 0.0
    %92 = vmatpush1.msra.mxu0 0.0
    %93 = vmatprep.subr.mxu0 0.0
    %94 = vmatpush1.msra.mxu0 0.0
    %95 = vmatprep.subr.mxu0 0.0
    %96 = vmatpush1.msra.mxu0 0.0
    %97 = vmatprep.subr.mxu0 0.0
    %98 = vmatpush1.msra.mxu0 0.0
    %99 = vmatprep.subr.mxu0 0.0
    %100 = vmatpush1.msra.mxu0 0.0
    %101 = vmatprep.subr.mxu0 0.0
    %102 = vmatpush1.msra.mxu0 0.0
    %103 = vmatprep.subr.mxu0 0.0
    %104 = vmatpush1.msra.mxu0 0.0
    %105 = vmatprep.subr.mxu0 0.0
    %106 = vmatpush1.msra.mxu0 %v51
    %107 = vmatprep.subr.mxu0 0.0
    %108 = vmatpush1.msra.mxu0 %v50
    %109 = vmatprep.subr.mxu0 0.0
    %110 = vmatpush2.msra.mxu0 0.0
    %111 = vmatprep.subr.mxu0 0.0
    %112 = vmatpush2.msra.mxu0 0.0
    %113 = vmatprep.subr.mxu0 0.0
    %114 = vmatpush2.msra.mxu0 0.0
    %115 = vmatprep.subr.mxu0 0.0
    %116 = vmatpush2.msra.mxu0 0.0
    %117 = vmatprep.subr.mxu0 0.0
    %118 = vmatpush2.msra.mxu0 0.0
    %119 = vmatprep.subr.mxu0 0.0
    %120 = vmatpush2.msra.mxu0 0.0
    %121 = vmatprep.subr.mxu0 0.0
    %122 = vmatpush2.msra.mxu0 0.0
    %123 = vmatprep.subr.mxu0 0.0
    %124 = vmatpush2.msra.mxu0 0.0
    %125 = vmatprep.subr.mxu0 0.0
    %126 = vmatpush2.msra.mxu0 0.0
    %127 = vmatprep.subr.mxu0 0.0
    %128 = vmatpush2.msra.mxu0 0.0
    %129 = vmatprep.subr.mxu0 0.0
    %130 = vmatpush2.msra.mxu0 0.0
    %131 = vmatprep.subr.mxu0 0.0
    %132 = vmatpush2.msra.mxu0 0.0
    %133 = vmatprep.subr.mxu0 0.0
    %134 = vmatpush2.msra.mxu0 0.0
    %135 = vmatprep.subr.mxu0 0.0
    %136 = vmatpush2.msra.mxu0 0.0
    %137 = vmatprep.subr.mxu0 0.0
    %138 = vmatpush2.msra.mxu0 0.0
    %139 = vmatprep.subr.mxu0 0.0
    %140 = vmatpush2.msra.mxu0 0.0
    %141 = vmatprep.mubr.f32.mxu0 0.0
    %142 = vmatmul.mubr.f32.gmra.mxu0 %v75
    %v143 = vpop.f32.mrf.mxu0
    %v144 = vadd.f32 %v72, %v143
    %v145 = vpop.f32.mrf.mxu0
    %146 = vdwg.mxu0
    %vm147 = vcmask 261120
    %v149 = vsel %vm147, %v144, 0
    %151 = vmatprep.subr.mxu0 0.0
    %152 = vmatpush1.msra.mxu0 0.0
    %153 = vmatprep.subr.mxu0 0.0
    %154 = vmatpush1.msra.mxu0 0.0
    %155 = vmatprep.subr.mxu0 0.0
    %156 = vmatpush1.msra.mxu0 0.0
    %157 = vmatprep.subr.mxu0 0.0
    %158 = vmatpush1.msra.mxu0 0.0
    %159 = vmatprep.subr.mxu0 0.0
    %160 = vmatpush1.msra.mxu0 0.0
    %161 = vmatprep.subr.mxu0 0.0
    %162 = vmatpush1.msra.mxu0 0.0
    %163 = vmatprep.subr.mxu0 0.0
    %164 = vmatpush1.msra.mxu0 0.0
    %165 = vmatprep.subr.mxu0 0.0
    %166 = vmatpush1.msra.mxu0 0.0
    %167 = vmatprep.subr.mxu0 0.0
    %168 = vmatpush1.msra.mxu0 0.0
    %169 = vmatprep.subr.mxu0 0.0
    %170 = vmatpush1.msra.mxu0 0.0
    %171 = vmatprep.subr.mxu0 0.0
    %172 = vmatpush1.msra.mxu0 0.0
    %173 = vmatprep.subr.mxu0 0.0
    %174 = vmatpush1.msra.mxu0 0.0
    %175 = vmatprep.subr.mxu0 0.0
    %176 = vmatpush1.msra.mxu0 %v41
    %177 = vmatprep.subr.mxu0 0.0
    %178 = vmatpush1.msra.mxu0 %v40
    %179 = vmatprep.subr.mxu0 0.0
    %180 = vmatpush1.msra.mxu0 %v39
    %181 = vmatprep.subr.mxu0 0.0
    %182 = vmatpush1.msra.mxu0 %v38
    %183 = vmatprep.subr.mxu0 0.0
    %184 = vmatpush2.msra.mxu0 0.0
    %185 = vmatprep.subr.mxu0 0.0
    %186 = vmatpush2.msra.mxu0 0.0
    %187 = vmatprep.subr.mxu0 0.0
    %188 = vmatpush2.msra.mxu0 0.0
    %189 = vmatprep.subr.mxu0 0.0
    %190 = vmatpush2.msra.mxu0 0.0
    %191 = vmatprep.subr.mxu0 0.0
    %192 = vmatpush2.msra.mxu0 0.0
    %193 = vmatprep.subr.mxu0 0.0
    %194 = vmatpush2.msra.mxu0 0.0
    %195 = vmatprep.subr.mxu0 0.0
    %196 = vmatpush2.msra.mxu0 0.0
    %197 = vmatprep.subr.mxu0 0.0
    %198 = vmatpush2.msra.mxu0 0.0
    %199 = vmatprep.subr.mxu0 0.0
    %200 = vmatpush2.msra.mxu0 0.0
    %201 = vmatprep.subr.mxu0 0.0
    %202 = vmatpush2.msra.mxu0 0.0
    %203 = vmatprep.subr.mxu0 0.0
    %204 = vmatpush2.msra.mxu0 0.0
    %205 = vmatprep.subr.mxu0 0.0
    %206 = vmatpush2.msra.mxu0 0.0
    %207 = vmatprep.subr.mxu0 0.0
    %208 = vmatpush2.msra.mxu0 0.0
    %209 = vmatprep.subr.mxu0 0.0
    %210 = vmatpush2.msra.mxu0 0.0
    %211 = vmatprep.subr.mxu0 0.0
    %212 = vmatpush2.msra.mxu0 0.0
    %213 = vmatprep.subr.mxu0 0.0
    %214 = vmatpush2.msra.mxu0 0.0
    %215 = vmatprep.mubr.f32.mxu0 0.0
    %216 = vmatmul.mubr.f32.gmra.mxu0 %v149
    %v217 = vpop.f32.mrf.mxu0
    %v218 = vadd.f32 %v61, %v217
    %v219 = vpop.f32.mrf.mxu0
    %220 = vdwg.mxu0
    %v221 = vxor.u32 %v218, 2147483648
    %v222 = vmul.f32 %v221, 1.442695
    %v223 = vpow.pop %v222
    %v224 = vadd.f32 %v223, 1.0
    %v225 = vrcp.pop %v224
    %v226 = vmul.f32 1.0, %v225
    %v227 = vtanh.pop %v218
    %v228 = vmul.f32 %v226, 0.0
    %230 = vrot.lane.b32.xlu0 %v227, 64
    %v231 = vpop.permute.xlu0 %230
    %v233 = vmul.f32 %v226, %v231
    %235 = vrot.lane.b32.xlu0 %v233, 32
    %v236 = vpop.permute.xlu0 %235
    %v238 = vadd.f32 %v228, %v236
    %v239 = vtanh.pop %v238
    %241 = vrot.lane.b32.xlu0 %v239, 64
    %v242 = vpop.permute.xlu0 %241
    %v244 = vmul.f32 %v226, %v242
    %245 = vmatprep.subr.mxu0 0.0
    %246 = vmatpush1.msra.mxu0 0.0
    %247 = vmatprep.subr.mxu0 0.0
    %248 = vmatpush1.msra.mxu0 0.0
    %249 = vmatprep.subr.mxu0 0.0
    %250 = vmatpush1.msra.mxu0 0.0
    %251 = vmatprep.subr.mxu0 0.0
    %252 = vmatpush1.msra.mxu0 0.0
    %253 = vmatprep.subr.mxu0 0.0
    %254 = vmatpush1.msra.mxu0 0.0
    %255 = vmatprep.subr.mxu0 0.0
    %256 = vmatpush1.msra.mxu0 0.0
    %257 = vmatprep.subr.mxu0 0.0
    %258 = vmatpush1.msra.mxu0 0.0
    %259 = vmatprep.subr.mxu0 0.0
    %260 = vmatpush1.msra.mxu0 0.0
    %261 = vmatprep.subr.mxu0 0.0
    %262 = vmatpush1.msra.mxu0 0.0
    %263 = vmatprep.subr.mxu0 0.0
    %264 = vmatpush1.msra.mxu0 0.0
    %265 = vmatprep.subr.mxu0 0.0
    %266 = vmatpush1.msra.mxu0 0.0
    %267 = vmatprep.subr.mxu0 0.0
    %268 = vmatpush1.msra.mxu0 0.0
    %269 = vmatprep.subr.mxu0 0.0
    %270 = vmatpush1.msra.mxu0 %v45
    %271 = vmatprep.subr.mxu0 0.0
    %272 = vmatpush1.msra.mxu0 %v44
    %273 = vmatprep.subr.mxu0 0.0
    %274 = vmatpush1.msra.mxu0 %v43
    %275 = vmatprep.subr.mxu0 0.0
    %276 = vmatpush1.msra.mxu0 %v42
    %277 = vmatprep.subr.mxu0 0.0
    %278 = vmatpush2.msra.mxu0 0.0
    %279 = vmatprep.subr.mxu0 0.0
    %280 = vmatpush2.msra.mxu0 0.0
    %281 = vmatprep.subr.mxu0 0.0
    %282 = vmatpush2.msra.mxu0 0.0
    %283 = vmatprep.subr.mxu0 0.0
    %284 = vmatpush2.msra.mxu0 0.0
    %285 = vmatprep.subr.mxu0 0.0
    %286 = vmatpush2.msra.mxu0 0.0
    %287 = vmatprep.subr.mxu0 0.0
    %288 = vmatpush2.msra.mxu0 0.0
    %289 = vmatprep.subr.mxu0 0.0
    %290 = vmatpush2.msra.mxu0 0.0
    %291 = vmatprep.subr.mxu0 0.0
    %292 = vmatpush2.msra.mxu0 0.0
    %293 = vmatprep.subr.mxu0 0.0
    %294 = vmatpush2.msra.mxu0 0.0
    %295 = vmatprep.subr.mxu0 0.0
    %296 = vmatpush2.msra.mxu0 0.0
    %297 = vmatprep.subr.mxu0 0.0
    %298 = vmatpush2.msra.mxu0 0.0
    %299 = vmatprep.subr.mxu0 0.0
    %300 = vmatpush2.msra.mxu0 0.0
    %301 = vmatprep.subr.mxu0 0.0
    %302 = vmatpush2.msra.mxu0 0.0
    %303 = vmatprep.subr.mxu0 0.0
    %304 = vmatpush2.msra.mxu0 0.0
    %305 = vmatprep.subr.mxu0 0.0
    %306 = vmatpush2.msra.mxu0 0.0
    %307 = vmatprep.subr.mxu0 0.0
    %308 = vmatpush2.msra.mxu0 0.0
    %309 = vmatprep.mubr.f32.mxu0 0.0
    %310 = vmatmul.mubr.f32.gmra.mxu0 %v149
    %v311 = vpop.f32.mrf.mxu0
    %v312 = vadd.f32 %v66, %v311
    %v313 = vpop.f32.mrf.mxu0
    %314 = vdwg.mxu0
    %316 = vrot.lane.b32.xlu0 %v244, 32
    %v317 = vpop.permute.xlu0 %316
    %v318 = vsel %vm147, %v317, 0
    %320 = vmatprep.subr.mxu0 0.0
    %321 = vmatpush1.msra.mxu0 0.0
    %322 = vmatprep.subr.mxu0 0.0
    %323 = vmatpush1.msra.mxu0 0.0
    %324 = vmatprep.subr.mxu0 0.0
    %325 = vmatpush1.msra.mxu0 0.0
    %326 = vmatprep.subr.mxu0 0.0
    %327 = vmatpush1.msra.mxu0 0.0
    %328 = vmatprep.subr.mxu0 0.0
    %329 = vmatpush1.msra.mxu0 0.0
    %330 = vmatprep.subr.mxu0 0.0
    %331 = vmatpush1.msra.mxu0 0.0
    %332 = vmatprep.subr.mxu0 0.0
    %333 = vmatpush1.msra.mxu0 0.0
    %334 = vmatprep.subr.mxu0 0.0
    %335 = vmatpush1.msra.mxu0 0.0
    %336 = vmatprep.subr.mxu0 0.0
    %337 = vmatpush1.msra.mxu0 0.0
    %338 = vmatprep.subr.mxu0 0.0
    %339 = vmatpush1.msra.mxu0 0.0
    %340 = vmatprep.subr.mxu0 0.0
    %341 = vmatpush1.msra.mxu0 0.0
    %342 = vmatprep.subr.mxu0 0.0
    %343 = vmatpush1.msra.mxu0 0.0
    %344 = vmatprep.subr.mxu0 0.0
    %345 = vmatpush1.msra.mxu0 %v49
    %346 = vmatprep.subr.mxu0 0.0
    %347 = vmatpush1.msra.mxu0 %v48
    %348 = vmatprep.subr.mxu0 0.0
    %349 = vmatpush1.msra.mxu0 %v47
    %350 = vmatprep.subr.mxu0 0.0
    %351 = vmatpush1.msra.mxu0 %v46
    %352 = vmatprep.subr.mxu0 0.0
    %353 = vmatpush2.msra.mxu0 0.0
    %354 = vmatprep.subr.mxu0 0.0
    %355 = vmatpush2.msra.mxu0 0.0
    %356 = vmatprep.subr.mxu0 0.0
    %357 = vmatpush2.msra.mxu0 0.0
    %358 = vmatprep.subr.mxu0 0.0
    %359 = vmatpush2.msra.mxu0 0.0
    %360 = vmatprep.subr.mxu0 0.0
    %361 = vmatpush2.msra.mxu0 0.0
    %362 = vmatprep.subr.mxu0 0.0
    %363 = vmatpush2.msra.mxu0 0.0
    %364 = vmatprep.subr.mxu0 0.0
    %365 = vmatpush2.msra.mxu0 0.0
    %366 = vmatprep.subr.mxu0 0.0
    %367 = vmatpush2.msra.mxu0 0.0
    %368 = vmatprep.subr.mxu0 0.0
    %369 = vmatpush2.msra.mxu0 0.0
    %370 = vmatprep.subr.mxu0 0.0
    %371 = vmatpush2.msra.mxu0 0.0
    %372 = vmatprep.subr.mxu0 0.0
    %373 = vmatpush2.msra.mxu0 0.0
    %374 = vmatprep.subr.mxu0 0.0
    %375 = vmatpush2.msra.mxu0 0.0
    %376 = vmatprep.subr.mxu0 0.0
    %377 = vmatpush2.msra.mxu0 0.0
    %378 = vmatprep.subr.mxu0 0.0
    %379 = vmatpush2.msra.mxu0 0.0
    %380 = vmatprep.subr.mxu0 0.0
    %381 = vmatpush2.msra.mxu0 0.0
    %382 = vmatprep.subr.mxu0 0.0
    %383 = vmatpush2.msra.mxu0 0.0
    %384 = vmatprep.mubr.f32.mxu0 0.0
    %385 = vmatmul.mubr.f32.gmra.mxu0 %v318
    %v386 = vpop.f32.mrf.mxu0
    %v387 = vadd.f32 0.0, %v386
    %v388 = vpop.f32.mrf.mxu0
    %389 = vdwg.mxu0
    %v390 = vadd.f32 %v312, %v387
    %v391 = vxor.u32 %v390, 2147483648
    %v392 = vmul.f32 %v391, 1.442695
    %v393 = vpow.pop %v392
    %v394 = vadd.f32 %v393, 1.0
    %v395 = vrcp.pop %v394
    %v396 = vmul.f32 1.0, %v395
    %v397 = vtanh.pop %v390
    %v398 = vmul.f32 %v396, 0.0
    %400 = vrot.lane.b32.xlu0 %v397, 64
    %v401 = vpop.permute.xlu0 %400
    %v403 = vmul.f32 %v396, %v401
    %405 = vrot.lane.b32.xlu0 %v403, 32
    %v406 = vpop.permute.xlu0 %405
    %v408 = vadd.f32 %v398, %v406
    %v409 = vtanh.pop %v408
    %411 = vrot.lane.b32.xlu0 %v409, 64
    %v412 = vpop.permute.xlu0 %411
    %v414 = vmul.f32 %v396, %v412
    %416 = vrot.lane.b32.xlu0 %v414, 32
    %v417 = vpop.permute.xlu0 %416
    %vm419 = vcmask 254976
    %420 = vst.msk [vmem:[#allocation2] sm:$0x3] %vm419, %v417
    %421 = vmatprep.subr.mxu0 0.0
    %422 = vmatpush1.msra.mxu0 0.0
    %423 = vmatprep.subr.mxu0 0.0
    %424 = vmatpush1.msra.mxu0 0.0
    %425 = vmatprep.subr.mxu0 0.0
    %426 = vmatpush1.msra.mxu0 0.0
    %427 = vmatprep.subr.mxu0 0.0
    %428 = vmatpush1.msra.mxu0 0.0
    %429 = vmatprep.subr.mxu0 0.0
    %430 = vmatpush1.msra.mxu0 0.0
    %431 = vmatprep.subr.mxu0 0.0
    %432 = vmatpush1.msra.mxu0 0.0
    %433 = vmatprep.subr.mxu0 0.0
    %434 = vmatpush1.msra.mxu0 0.0
    %435 = vmatprep.subr.mxu0 0.0
    %436 = vmatpush1.msra.mxu0 0.0
    %437 = vmatprep.subr.mxu0 0.0
    %438 = vmatpush1.msra.mxu0 0.0
    %439 = vmatprep.subr.mxu0 0.0
    %440 = vmatpush1.msra.mxu0 0.0
    %441 = vmatprep.subr.mxu0 0.0
    %442 = vmatpush1.msra.mxu0 0.0
    %443 = vmatprep.subr.mxu0 0.0
    %444 = vmatpush1.msra.mxu0 0.0
    %445 = vmatprep.subr.mxu0 0.0
    %446 = vmatpush1.msra.mxu0 %v41
    %447 = vmatprep.subr.mxu0 0.0
    %448 = vmatpush1.msra.mxu0 %v40
    %449 = vmatprep.subr.mxu0 0.0
    %450 = vmatpush1.msra.mxu0 %v39
    %451 = vmatprep.subr.mxu0 0.0
    %452 = vmatpush1.msra.mxu0 %v38
    %453 = vmatprep.subr.mxu0 0.0
    %454 = vmatpush2.msra.mxu0 0.0
    %455 = vmatprep.subr.mxu0 0.0
    %456 = vmatpush2.msra.mxu0 0.0
    %457 = vmatprep.subr.mxu0 0.0
    %458 = vmatpush2.msra.mxu0 0.0
    %459 = vmatprep.subr.mxu0 0.0
    %460 = vmatpush2.msra.mxu0 0.0
    %461 = vmatprep.subr.mxu0 0.0
    %462 = vmatpush2.msra.mxu0 0.0
    %463 = vmatprep.subr.mxu0 0.0
    %464 = vmatpush2.msra.mxu0 0.0
    %465 = vmatprep.subr.mxu0 0.0
    %466 = vmatpush2.msra.mxu0 0.0
    %467 = vmatprep.subr.mxu0 0.0
    %468 = vmatpush2.msra.mxu0 0.0
    %469 = vmatprep.subr.mxu0 0.0
    %470 = vmatpush2.msra.mxu0 0.0
    %471 = vmatprep.subr.mxu0 0.0
    %472 = vmatpush2.msra.mxu0 0.0
    %473 = vmatprep.subr.mxu0 0.0
    %474 = vmatpush2.msra.mxu0 0.0
    %475 = vmatprep.subr.mxu0 0.0
    %476 = vmatpush2.msra.mxu0 0.0
    %477 = vmatprep.subr.mxu0 0.0
    %478 = vmatpush2.msra.mxu0 0.0
    %479 = vmatprep.subr.mxu0 0.0
    %480 = vmatpush2.msra.mxu0 0.0
    %481 = vmatprep.subr.mxu0 0.0
    %482 = vmatpush2.msra.mxu0 0.0
    %483 = vmatprep.subr.mxu0 0.0
    %484 = vmatpush2.msra.mxu0 0.0
    %485 = vmatprep.mubr.f32.mxu0 0.0
    %486 = vmatmul.mubr.f32.gmra.mxu0 %v318
    %v487 = vpop.f32.mrf.mxu0
    %v488 = vadd.f32 %v61, %v487
    %v489 = vpop.f32.mrf.mxu0
    %490 = vdwg.mxu0
    %v491 = vxor.u32 %v488, 2147483648
    %v492 = vmul.f32 %v491, 1.442695
    %v493 = vpow.pop %v492
    %v494 = vadd.f32 %v493, 1.0
    %v495 = vrcp.pop %v494
    %v496 = vmul.f32 1.0, %v495
    %v497 = vtanh.pop %v488
    %v498 = vmul.f32 %v496, %v238
    %500 = vrot.lane.b32.xlu0 %v497, 64
    %v501 = vpop.permute.xlu0 %500
    %v503 = vmul.f32 %v496, %v501
    %505 = vrot.lane.b32.xlu0 %v503, 32
    %v506 = vpop.permute.xlu0 %505
    %v508 = vadd.f32 %v498, %v506
    %v509 = vtanh.pop %v508
    %511 = vrot.lane.b32.xlu0 %v509, 64
    %v512 = vpop.permute.xlu0 %511
    %v514 = vmul.f32 %v496, %v512
    %v515 = vsel %vm147, %v417, 0
    %517 = vmatprep.subr.mxu0 0.0
    %518 = vmatpush1.msra.mxu0 0.0
    %519 = vmatprep.subr.mxu0 0.0
    %520 = vmatpush1.msra.mxu0 0.0
    %521 = vmatprep.subr.mxu0 0.0
    %522 = vmatpush1.msra.mxu0 0.0
    %523 = vmatprep.subr.mxu0 0.0
    %524 = vmatpush1.msra.mxu0 0.0
    %525 = vmatprep.subr.mxu0 0.0
    %526 = vmatpush1.msra.mxu0 0.0
    %527 = vmatprep.subr.mxu0 0.0
    %528 = vmatpush1.msra.mxu0 0.0
    %529 = vmatprep.subr.mxu0 0.0
    %530 = vmatpush1.msra.mxu0 0.0
    %531 = vmatprep.subr.mxu0 0.0
    %532 = vmatpush1.msra.mxu0 0.0
    %533 = vmatprep.subr.mxu0 0.0
    %534 = vmatpush1.msra.mxu0 0.0
    %535 = vmatprep.subr.mxu0 0.0
    %536 = vmatpush1.msra.mxu0 0.0
    %537 = vmatprep.subr.mxu0 0.0
    %538 = vmatpush1.msra.mxu0 0.0
    %539 = vmatprep.subr.mxu0 0.0
    %540 = vmatpush1.msra.mxu0 0.0
    %541 = vmatprep.subr.mxu0 0.0
    %542 = vmatpush1.msra.mxu0 %v45
    %543 = vmatprep.subr.mxu0 0.0
    %544 = vmatpush1.msra.mxu0 %v44
    %545 = vmatprep.subr.mxu0 0.0
    %546 = vmatpush1.msra.mxu0 %v43
    %547 = vmatprep.subr.mxu0 0.0
    %548 = vmatpush1.msra.mxu0 %v42
    %549 = vmatprep.subr.mxu0 0.0
    %550 = vmatpush2.msra.mxu0 0.0
    %551 = vmatprep.subr.mxu0 0.0
    %552 = vmatpush2.msra.mxu0 0.0
    %553 = vmatprep.subr.mxu0 0.0
    %554 = vmatpush2.msra.mxu0 0.0
    %555 = vmatprep.subr.mxu0 0.0
    %556 = vmatpush2.msra.mxu0 0.0
    %557 = vmatprep.subr.mxu0 0.0
    %558 = vmatpush2.msra.mxu0 0.0
    %559 = vmatprep.subr.mxu0 0.0
    %560 = vmatpush2.msra.mxu0 0.0
    %561 = vmatprep.subr.mxu0 0.0
    %562 = vmatpush2.msra.mxu0 0.0
    %563 = vmatprep.subr.mxu0 0.0
    %564 = vmatpush2.msra.mxu0 0.0
    %565 = vmatprep.subr.mxu0 0.0
    %566 = vmatpush2.msra.mxu0 0.0
    %567 = vmatprep.subr.mxu0 0.0
    %568 = vmatpush2.msra.mxu0 0.0
    %569 = vmatprep.subr.mxu0 0.0
    %570 = vmatpush2.msra.mxu0 0.0
    %571 = vmatprep.subr.mxu0 0.0
    %572 = vmatpush2.msra.mxu0 0.0
    %573 = vmatprep.subr.mxu0 0.0
    %574 = vmatpush2.msra.mxu0 0.0
    %575 = vmatprep.subr.mxu0 0.0
    %576 = vmatpush2.msra.mxu0 0.0
    %577 = vmatprep.subr.mxu0 0.0
    %578 = vmatpush2.msra.mxu0 0.0
    %579 = vmatprep.subr.mxu0 0.0
    %580 = vmatpush2.msra.mxu0 0.0
    %581 = vmatprep.mubr.f32.mxu0 0.0
    %582 = vmatmul.mubr.f32.gmra.mxu0 %v515
    %v583 = vpop.f32.mrf.mxu0
    %v584 = vadd.f32 %v66, %v583
    %v585 = vpop.f32.mrf.mxu0
    %586 = vdwg.mxu0
    %588 = vrot.lane.b32.xlu0 %v514, 32
    %v589 = vpop.permute.xlu0 %588
    %v590 = vsel %vm147, %v589, 0
    %592 = vmatprep.subr.mxu0 0.0
    %593 = vmatpush1.msra.mxu0 0.0
    %594 = vmatprep.subr.mxu0 0.0
    %595 = vmatpush1.msra.mxu0 0.0
    %596 = vmatprep.subr.mxu0 0.0
    %597 = vmatpush1.msra.mxu0 0.0
    %598 = vmatprep.subr.mxu0 0.0
    %599 = vmatpush1.msra.mxu0 0.0
    %600 = vmatprep.subr.mxu0 0.0
    %601 = vmatpush1.msra.mxu0 0.0
    %602 = vmatprep.subr.mxu0 0.0
    %603 = vmatpush1.msra.mxu0 0.0
    %604 = vmatprep.subr.mxu0 0.0
    %605 = vmatpush1.msra.mxu0 0.0
    %606 = vmatprep.subr.mxu0 0.0
    %607 = vmatpush1.msra.mxu0 0.0
    %608 = vmatprep.subr.mxu0 0.0
    %609 = vmatpush1.msra.mxu0 0.0
    %610 = vmatprep.subr.mxu0 0.0
    %611 = vmatpush1.msra.mxu0 0.0
    %612 = vmatprep.subr.mxu0 0.0
    %613 = vmatpush1.msra.mxu0 0.0
    %614 = vmatprep.subr.mxu0 0.0
    %615 = vmatpush1.msra.mxu0 0.0
    %616 = vmatprep.subr.mxu0 0.0
    %617 = vmatpush1.msra.mxu0 %v49
    %618 = vmatprep.subr.mxu0 0.0
    %619 = vmatpush1.msra.mxu0 %v48
    %620 = vmatprep.subr.mxu0 0.0
    %621 = vmatpush1.msra.mxu0 %v47
    %622 = vmatprep.subr.mxu0 0.0
    %623 = vmatpush1.msra.mxu0 %v46
    %624 = vmatprep.subr.mxu0 0.0
    %625 = vmatpush2.msra.mxu0 0.0
    %626 = vmatprep.subr.mxu0 0.0
    %627 = vmatpush2.msra.mxu0 0.0
    %628 = vmatprep.subr.mxu0 0.0
    %629 = vmatpush2.msra.mxu0 0.0
    %630 = vmatprep.subr.mxu0 0.0
    %631 = vmatpush2.msra.mxu0 0.0
    %632 = vmatprep.subr.mxu0 0.0
    %633 = vmatpush2.msra.mxu0 0.0
    %634 = vmatprep.subr.mxu0 0.0
    %635 = vmatpush2.msra.mxu0 0.0
    %636 = vmatprep.subr.mxu0 0.0
    %637 = vmatpush2.msra.mxu0 0.0
    %638 = vmatprep.subr.mxu0 0.0
    %639 = vmatpush2.msra.mxu0 0.0
    %640 = vmatprep.subr.mxu0 0.0
    %641 = vmatpush2.msra.mxu0 0.0
    %642 = vmatprep.subr.mxu0 0.0
    %643 = vmatpush2.msra.mxu0 0.0
    %644 = vmatprep.subr.mxu0 0.0
    %645 = vmatpush2.msra.mxu0 0.0
    %646 = vmatprep.subr.mxu0 0.0
    %647 = vmatpush2.msra.mxu0 0.0
    %648 = vmatprep.subr.mxu0 0.0
    %649 = vmatpush2.msra.mxu0 0.0
    %650 = vmatprep.subr.mxu0 0.0
    %651 = vmatpush2.msra.mxu0 0.0
    %652 = vmatprep.subr.mxu0 0.0
    %653 = vmatpush2.msra.mxu0 0.0
    %654 = vmatprep.subr.mxu0 0.0
    %655 = vmatpush2.msra.mxu0 0.0
    %656 = vmatprep.mubr.f32.mxu0 0.0
    %657 = vmatmul.mubr.f32.gmra.mxu0 %v590
    %v658 = vpop.f32.mrf.mxu0
    %v659 = vadd.f32 0.0, %v658
    %v660 = vpop.f32.mrf.mxu0
    %661 = vdwg.mxu0
    %v662 = vadd.f32 %v584, %v659
    %v663 = vxor.u32 %v662, 2147483648
    %v664 = vmul.f32 %v663, 1.442695
    %v665 = vpow.pop %v664
    %v666 = vadd.f32 %v665, 1.0
    %v667 = vrcp.pop %v666
    %v668 = vmul.f32 1.0, %v667
    %v669 = vtanh.pop %v662
    %v670 = vmul.f32 %v668, %v408
    %672 = vrot.lane.b32.xlu0 %v669, 64
    %v673 = vpop.permute.xlu0 %672
    %v675 = vmul.f32 %v668, %v673
    %677 = vrot.lane.b32.xlu0 %v675, 32
    %v678 = vpop.permute.xlu0 %677
    %v680 = vadd.f32 %v670, %v678
    %v681 = vtanh.pop %v680
    %683 = vrot.lane.b32.xlu0 %v681, 64
    %v684 = vpop.permute.xlu0 %683
    %v686 = vmul.f32 %v668, %v684
    %688 = vrot.lane.b32.xlu0 %v686, 32
    %v689 = vpop.permute.xlu0 %688
    %691 = vst.msk [vmem:[#allocation2 + $0x2] sm:$0x3] %vm419, %v689
    %692 = vmatprep.subr.mxu0 0.0
    %693 = vmatpush1.msra.mxu0 0.0
    %694 = vmatprep.subr.mxu0 0.0
    %695 = vmatpush1.msra.mxu0 0.0
    %696 = vmatprep.subr.mxu0 0.0
    %697 = vmatpush1.msra.mxu0 0.0
    %698 = vmatprep.subr.mxu0 0.0
    %699 = vmatpush1.msra.mxu0 0.0
    %700 = vmatprep.subr.mxu0 0.0
    %701 = vmatpush1.msra.mxu0 0.0
    %702 = vmatprep.subr.mxu0 0.0
    %703 = vmatpush1.msra.mxu0 0.0
    %704 = vmatprep.subr.mxu0 0.0
    %705 = vmatpush1.msra.mxu0 0.0
    %706 = vmatprep.subr.mxu0 0.0
    %707 = vmatpush1.msra.mxu0 0.0
    %708 = vmatprep.subr.mxu0 0.0
    %709 = vmatpush1.msra.mxu0 0.0
    %710 = vmatprep.subr.mxu0 0.0
    %711 = vmatpush1.msra.mxu0 0.0
    %712 = vmatprep.subr.mxu0 0.0
    %713 = vmatpush1.msra.mxu0 0.0
    %714 = vmatprep.subr.mxu0 0.0
    %715 = vmatpush1.msra.mxu0 0.0
    %716 = vmatprep.subr.mxu0 0.0
    %717 = vmatpush1.msra.mxu0 %v41
    %718 = vmatprep.subr.mxu0 0.0
    %719 = vmatpush1.msra.mxu0 %v40
    %720 = vmatprep.subr.mxu0 0.0
    %721 = vmatpush1.msra.mxu0 %v39
    %722 = vmatprep.subr.mxu0 0.0
    %723 = vmatpush1.msra.mxu0 %v38
    %724 = vmatprep.subr.mxu0 0.0
    %725 = vmatpush2.msra.mxu0 0.0
    %726 = vmatprep.subr.mxu0 0.0
    %727 = vmatpush2.msra.mxu0 0.0
    %728 = vmatprep.subr.mxu0 0.0
    %729 = vmatpush2.msra.mxu0 0.0
    %730 = vmatprep.subr.mxu0 0.0
    %731 = vmatpush2.msra.mxu0 0.0
    %732 = vmatprep.subr.mxu0 0.0
    %733 = vmatpush2.msra.mxu0 0.0
    %734 = vmatprep.subr.mxu0 0.0
    %735 = vmatpush2.msra.mxu0 0.0
    %736 = vmatprep.subr.mxu0 0.0
    %737 = vmatpush2.msra.mxu0 0.0
    %738 = vmatprep.subr.mxu0 0.0
    %739 = vmatpush2.msra.mxu0 0.0
    %740 = vmatprep.subr.mxu0 0.0
    %741 = vmatpush2.msra.mxu0 0.0
    %742 = vmatprep.subr.mxu0 0.0
    %743 = vmatpush2.msra.mxu0 0.0
    %744 = vmatprep.subr.mxu0 0.0
    %745 = vmatpush2.msra.mxu0 0.0
    %746 = vmatprep.subr.mxu0 0.0
    %747 = vmatpush2.msra.mxu0 0.0
    %748 = vmatprep.subr.mxu0 0.0
    %749 = vmatpush2.msra.mxu0 0.0
    %750 = vmatprep.subr.mxu0 0.0
    %751 = vmatpush2.msra.mxu0 0.0
    %752 = vmatprep.subr.mxu0 0.0
    %753 = vmatpush2.msra.mxu0 0.0
    %754 = vmatprep.subr.mxu0 0.0
    %755 = vmatpush2.msra.mxu0 0.0
    %756 = vmatprep.mubr.f32.mxu0 0.0
    %757 = vmatmul.mubr.f32.gmra.mxu0 %v590
    %v758 = vpop.f32.mrf.mxu0
    %v759 = vadd.f32 %v61, %v758
    %v760 = vpop.f32.mrf.mxu0
    %761 = vdwg.mxu0
    %v762 = vxor.u32 %v759, 2147483648
    %v763 = vmul.f32 %v762, 1.442695
    %v764 = vpow.pop %v763
    %v765 = vadd.f32 %v764, 1.0
    %v766 = vrcp.pop %v765
    %v767 = vmul.f32 1.0, %v766
    %v768 = vtanh.pop %v759
    %v769 = vmul.f32 %v767, %v508
    %771 = vrot.lane.b32.xlu0 %v768, 64
    %v772 = vpop.permute.xlu0 %771
    %v774 = vmul.f32 %v767, %v772
    %776 = vrot.lane.b32.xlu0 %v774, 32
    %v777 = vpop.permute.xlu0 %776
    %v779 = vadd.f32 %v769, %v777
    %v780 = vtanh.pop %v779
    %782 = vrot.lane.b32.xlu0 %v780, 64
    %v783 = vpop.permute.xlu0 %782
    %v785 = vmul.f32 %v767, %v783
    %v786 = vsel %vm147, %v689, 0
    %788 = vmatprep.subr.mxu0 0.0
    %789 = vmatpush1.msra.mxu0 0.0
    %790 = vmatprep.subr.mxu0 0.0
    %791 = vmatpush1.msra.mxu0 0.0
    %792 = vmatprep.subr.mxu0 0.0
    %793 = vmatpush1.msra.mxu0 0.0
    %794 = vmatprep.subr.mxu0 0.0
    %795 = vmatpush1.msra.mxu0 0.0
    %796 = vmatprep.subr.mxu0 0.0
    %797 = vmatpush1.msra.mxu0 0.0
    %798 = vmatprep.subr.mxu0 0.0
    %799 = vmatpush1.msra.mxu0 0.0
    %800 = vmatprep.subr.mxu0 0.0
    %801 = vmatpush1.msra.mxu0 0.0
    %802 = vmatprep.subr.mxu0 0.0
    %803 = vmatpush1.msra.mxu0 0.0
    %804 = vmatprep.subr.mxu0 0.0
    %805 = vmatpush1.msra.mxu0 0.0
    %806 = vmatprep.subr.mxu0 0.0
    %807 = vmatpush1.msra.mxu0 0.0
    %808 = vmatprep.subr.mxu0 0.0
    %809 = vmatpush1.msra.mxu0 0.0
    %810 = vmatprep.subr.mxu0 0.0
    %811 = vmatpush1.msra.mxu0 0.0
    %812 = vmatprep.subr.mxu0 0.0
    %813 = vmatpush1.msra.mxu0 %v45
    %814 = vmatprep.subr.mxu0 0.0
    %815 = vmatpush1.msra.mxu0 %v44
    %816 = vmatprep.subr.mxu0 0.0
    %817 = vmatpush1.msra.mxu0 %v43
    %818 = vmatprep.subr.mxu0 0.0
    %819 = vmatpush1.msra.mxu0 %v42
    %820 = vmatprep.subr.mxu0 0.0
    %821 = vmatpush2.msra.mxu0 0.0
    %822 = vmatprep.subr.mxu0 0.0
    %823 = vmatpush2.msra.mxu0 0.0
    %824 = vmatprep.subr.mxu0 0.0
    %825 = vmatpush2.msra.mxu0 0.0
    %826 = vmatprep.subr.mxu0 0.0
    %827 = vmatpush2.msra.mxu0 0.0
    %828 = vmatprep.subr.mxu0 0.0
    %829 = vmatpush2.msra.mxu0 0.0
    %830 = vmatprep.subr.mxu0 0.0
    %831 = vmatpush2.msra.mxu0 0.0
    %832 = vmatprep.subr.mxu0 0.0
    %833 = vmatpush2.msra.mxu0 0.0
    %834 = vmatprep.subr.mxu0 0.0
    %835 = vmatpush2.msra.mxu0 0.0
    %836 = vmatprep.subr.mxu0 0.0
    %837 = vmatpush2.msra.mxu0 0.0
    %838 = vmatprep.subr.mxu0 0.0
    %839 = vmatpush2.msra.mxu0 0.0
    %840 = vmatprep.subr.mxu0 0.0
    %841 = vmatpush2.msra.mxu0 0.0
    %842 = vmatprep.subr.mxu0 0.0
    %843 = vmatpush2.msra.mxu0 0.0
    %844 = vmatprep.subr.mxu0 0.0
    %845 = vmatpush2.msra.mxu0 0.0
    %846 = vmatprep.subr.mxu0 0.0
    %847 = vmatpush2.msra.mxu0 0.0
    %848 = vmatprep.subr.mxu0 0.0
    %849 = vmatpush2.msra.mxu0 0.0
    %850 = vmatprep.subr.mxu0 0.0
    %851 = vmatpush2.msra.mxu0 0.0
    %852 = vmatprep.mubr.f32.mxu0 0.0
    %853 = vmatmul.mubr.f32.gmra.mxu0 %v786
    %v854 = vpop.f32.mrf.mxu0
    %v855 = vadd.f32 %v66, %v854
    %v856 = vpop.f32.mrf.mxu0
    %857 = vdwg.mxu0
    %859 = vrot.lane.b32.xlu0 %v785, 32
    %v860 = vpop.permute.xlu0 %859
    %v861 = vsel %vm147, %v860, 0
    %863 = vmatprep.subr.mxu0 0.0
    %864 = vmatpush1.msra.mxu0 0.0
    %865 = vmatprep.subr.mxu0 0.0
    %866 = vmatpush1.msra.mxu0 0.0
    %867 = vmatprep.subr.mxu0 0.0
    %868 = vmatpush1.msra.mxu0 0.0
    %869 = vmatprep.subr.mxu0 0.0
    %870 = vmatpush1.msra.mxu0 0.0
    %871 = vmatprep.subr.mxu0 0.0
    %872 = vmatpush1.msra.mxu0 0.0
    %873 = vmatprep.subr.mxu0 0.0
    %874 = vmatpush1.msra.mxu0 0.0
    %875 = vmatprep.subr.mxu0 0.0
    %876 = vmatpush1.msra.mxu0 0.0
    %877 = vmatprep.subr.mxu0 0.0
    %878 = vmatpush1.msra.mxu0 0.0
    %879 = vmatprep.subr.mxu0 0.0
    %880 = vmatpush1.msra.mxu0 0.0
    %881 = vmatprep.subr.mxu0 0.0
    %882 = vmatpush1.msra.mxu0 0.0
    %883 = vmatprep.subr.mxu0 0.0
    %884 = vmatpush1.msra.mxu0 0.0
    %885 = vmatprep.subr.mxu0 0.0
    %886 = vmatpush1.msra.mxu0 0.0
    %887 = vmatprep.subr.mxu0 0.0
    %888 = vmatpush1.msra.mxu0 %v49
    %889 = vmatprep.subr.mxu0 0.0
    %890 = vmatpush1.msra.mxu0 %v48
    %891 = vmatprep.subr.mxu0 0.0
    %892 = vmatpush1.msra.mxu0 %v47
    %893 = vmatprep.subr.mxu0 0.0
    %894 = vmatpush1.msra.mxu0 %v46
    %895 = vmatprep.subr.mxu0 0.0
    %896 = vmatpush2.msra.mxu0 0.0
    %897 = vmatprep.subr.mxu0 0.0
    %898 = vmatpush2.msra.mxu0 0.0
    %899 = vmatprep.subr.mxu0 0.0
    %900 = vmatpush2.msra.mxu0 0.0
    %901 = vmatprep.subr.mxu0 0.0
    %902 = vmatpush2.msra.mxu0 0.0
    %903 = vmatprep.subr.mxu0 0.0
    %904 = vmatpush2.msra.mxu0 0.0
    %905 = vmatprep.subr.mxu0 0.0
    %906 = vmatpush2.msra.mxu0 0.0
    %907 = vmatprep.subr.mxu0 0.0
    %908 = vmatpush2.msra.mxu0 0.0
    %909 = vmatprep.subr.mxu0 0.0
    %910 = vmatpush2.msra.mxu0 0.0
    %911 = vmatprep.subr.mxu0 0.0
    %912 = vmatpush2.msra.mxu0 0.0
    %913 = vmatprep.subr.mxu0 0.0
    %914 = vmatpush2.msra.mxu0 0.0
    %915 = vmatprep.subr.mxu0 0.0
    %916 = vmatpush2.msra.mxu0 0.0
    %917 = vmatprep.subr.mxu0 0.0
    %918 = vmatpush2.msra.mxu0 0.0
    %919 = vmatprep.subr.mxu0 0.0
    %920 = vmatpush2.msra.mxu0 0.0
    %921 = vmatprep.subr.mxu0 0.0
    %922 = vmatpush2.msra.mxu0 0.0
    %923 = vmatprep.subr.mxu0 0.0
    %924 = vmatpush2.msra.mxu0 0.0
    %925 = vmatprep.subr.mxu0 0.0
    %926 = vmatpush2.msra.mxu0 0.0
    %927 = vmatprep.mubr.f32.mxu0 0.0
    %928 = vmatmul.mubr.f32.gmra.mxu0 %v861
    %v929 = vpop.f32.mrf.mxu0
    %v930 = vadd.f32 0.0, %v929
    %v931 = vpop.f32.mrf.mxu0
    %932 = vdwg.mxu0
    %v933 = vadd.f32 %v855, %v930
    %v934 = vxor.u32 %v933, 2147483648
    %v935 = vmul.f32 %v934, 1.442695
    %v936 = vpow.pop %v935
    %v937 = vadd.f32 %v936, 1.0
    %v938 = vrcp.pop %v937
    %v939 = vmul.f32 1.0, %v938
    %v940 = vtanh.pop %v933
    %v941 = vmul.f32 %v939, %v680
    %943 = vrot.lane.b32.xlu0 %v940, 64
    %v944 = vpop.permute.xlu0 %943
    %v946 = vmul.f32 %v939, %v944
    %948 = vrot.lane.b32.xlu0 %v946, 32
    %v949 = vpop.permute.xlu0 %948
    %v951 = vadd.f32 %v941, %v949
    %v952 = vtanh.pop %v951
    %954 = vrot.lane.b32.xlu0 %v952, 64
    %v955 = vpop.permute.xlu0 %954
    %v957 = vmul.f32 %v939, %v955
    %959 = vrot.lane.b32.xlu0 %v957, 32
    %v960 = vpop.permute.xlu0 %959
    %962 = vst.msk [vmem:[#allocation2 + $0x4] sm:$0x3] %vm419, %v960
    %963 = vmatprep.subr.mxu0 0.0
    %964 = vmatpush1.msra.mxu0 0.0
    %965 = vmatprep.subr.mxu0 0.0
    %966 = vmatpush1.msra.mxu0 0.0
    %967 = vmatprep.subr.mxu0 0.0
    %968 = vmatpush1.msra.mxu0 0.0
    %969 = vmatprep.subr.mxu0 0.0
    %970 = vmatpush1.msra.mxu0 0.0
    %971 = vmatprep.subr.mxu0 0.0
    %972 = vmatpush1.msra.mxu0 0.0
    %973 = vmatprep.subr.mxu0 0.0
    %974 = vmatpush1.msra.mxu0 0.0
    %975 = vmatprep.subr.mxu0 0.0
    %976 = vmatpush1.msra.mxu0 0.0
    %977 = vmatprep.subr.mxu0 0.0
    %978 = vmatpush1.msra.mxu0 0.0
    %979 = vmatprep.subr.mxu0 0.0
    %980 = vmatpush1.msra.mxu0 0.0
    %981 = vmatprep.subr.mxu0 0.0
    %982 = vmatpush1.msra.mxu0 0.0
    %983 = vmatprep.subr.mxu0 0.0
    %984 = vmatpush1.msra.mxu0 0.0
    %985 = vmatprep.subr.mxu0 0.0
    %986 = vmatpush1.msra.mxu0 0.0
    %987 = vmatprep.subr.mxu0 0.0
    %988 = vmatpush1.msra.mxu0 %v41
    %989 = vmatprep.subr.mxu0 0.0
    %990 = vmatpush1.msra.mxu0 %v40
    %991 = vmatprep.subr.mxu0 0.0
    %992 = vmatpush1.msra.mxu0 %v39
    %993 = vmatprep.subr.mxu0 0.0
    %994 = vmatpush1.msra.mxu0 %v38
    %995 = vmatprep.subr.mxu0 0.0
    %996 = vmatpush2.msra.mxu0 0.0
    %997 = vmatprep.subr.mxu0 0.0
    %998 = vmatpush2.msra.mxu0 0.0
    %999 = vmatprep.subr.mxu0 0.0
    %1000 = vmatpush2.msra.mxu0 0.0
    %1001 = vmatprep.subr.mxu0 0.0
    %1002 = vmatpush2.msra.mxu0 0.0
    %1003 = vmatprep.subr.mxu0 0.0
    %1004 = vmatpush2.msra.mxu0 0.0
    %1005 = vmatprep.subr.mxu0 0.0
    %1006 = vmatpush2.msra.mxu0 0.0
    %1007 = vmatprep.subr.mxu0 0.0
    %1008 = vmatpush2.msra.mxu0 0.0
    %1009 = vmatprep.subr.mxu0 0.0
    %1010 = vmatpush2.msra.mxu0 0.0
    %1011 = vmatprep.subr.mxu0 0.0
    %1012 = vmatpush2.msra.mxu0 0.0
    %1013 = vmatprep.subr.mxu0 0.0
    %1014 = vmatpush2.msra.mxu0 0.0
    %1015 = vmatprep.subr.mxu0 0.0
    %1016 = vmatpush2.msra.mxu0 0.0
    %1017 = vmatprep.subr.mxu0 0.0
    %1018 = vmatpush2.msra.mxu0 0.0
    %1019 = vmatprep.subr.mxu0 0.0
    %1020 = vmatpush2.msra.mxu0 0.0
    %1021 = vmatprep.subr.mxu0 0.0
    %1022 = vmatpush2.msra.mxu0 0.0
    %1023 = vmatprep.subr.mxu0 0.0
    %1024 = vmatpush2.msra.mxu0 0.0
    %1025 = vmatprep.subr.mxu0 0.0
    %1026 = vmatpush2.msra.mxu0 0.0
    %1027 = vmatprep.mubr.f32.mxu0 0.0
    %1028 = vmatmul.mubr.f32.gmra.mxu0 %v861
    %v1029 = vpop.f32.mrf.mxu0
    %v1030 = vadd.f32 %v61, %v1029
    %v1031 = vpop.f32.mrf.mxu0
    %1032 = vdwg.mxu0
    %v1033 = vxor.u32 %v1030, 2147483648
    %v1034 = vmul.f32 %v1033, 1.442695
    %v1035 = vpow.pop %v1034
    %v1036 = vadd.f32 %v1035, 1.0
    %v1037 = vrcp.pop %v1036
    %v1038 = vmul.f32 1.0, %v1037
    %v1039 = vtanh.pop %v1030
    %v1040 = vmul.f32 %v1038, %v779
    %1042 = vrot.lane.b32.xlu0 %v1039, 64
    %v1043 = vpop.permute.xlu0 %1042
    %v1045 = vmul.f32 %v1038, %v1043
    %1047 = vrot.lane.b32.xlu0 %v1045, 32
    %v1048 = vpop.permute.xlu0 %1047
    %v1050 = vadd.f32 %v1040, %v1048
    %v1051 = vtanh.pop %v1050
    %1053 = vrot.lane.b32.xlu0 %v1051, 64
    %v1054 = vpop.permute.xlu0 %1053
    %v1056 = vmul.f32 %v1038, %v1054
    %v1057 = vsel %vm147, %v960, 0
    %1059 = vmatprep.subr.mxu0 0.0
    %1060 = vmatpush1.msra.mxu0 0.0
    %1061 = vmatprep.subr.mxu0 0.0
    %1062 = vmatpush1.msra.mxu0 0.0
    %1063 = vmatprep.subr.mxu0 0.0
    %1064 = vmatpush1.msra.mxu0 0.0
    %1065 = vmatprep.subr.mxu0 0.0
    %1066 = vmatpush1.msra.mxu0 0.0
    %1067 = vmatprep.subr.mxu0 0.0
    %1068 = vmatpush1.msra.mxu0 0.0
    %1069 = vmatprep.subr.mxu0 0.0
    %1070 = vmatpush1.msra.mxu0 0.0
    %1071 = vmatprep.subr.mxu0 0.0
    %1072 = vmatpush1.msra.mxu0 0.0
    %1073 = vmatprep.subr.mxu0 0.0
    %1074 = vmatpush1.msra.mxu0 0.0
    %1075 = vmatprep.subr.mxu0 0.0
    %1076 = vmatpush1.msra.mxu0 0.0
    %1077 = vmatprep.subr.mxu0 0.0
    %1078 = vmatpush1.msra.mxu0 0.0
    %1079 = vmatprep.subr.mxu0 0.0
    %1080 = vmatpush1.msra.mxu0 0.0
    %1081 = vmatprep.subr.mxu0 0.0
    %1082 = vmatpush1.msra.mxu0 0.0
    %1083 = vmatprep.subr.mxu0 0.0
    %1084 = vmatpush1.msra.mxu0 %v45
    %1085 = vmatprep.subr.mxu0 0.0
    %1086 = vmatpush1.msra.mxu0 %v44
    %1087 = vmatprep.subr.mxu0 0.0
    %1088 = vmatpush1.msra.mxu0 %v43
    %1089 = vmatprep.subr.mxu0 0.0
    %1090 = vmatpush1.msra.mxu0 %v42
    %1091 = vmatprep.subr.mxu0 0.0
    %1092 = vmatpush2.msra.mxu0 0.0
    %1093 = vmatprep.subr.mxu0 0.0
    %1094 = vmatpush2.msra.mxu0 0.0
    %1095 = vmatprep.subr.mxu0 0.0
    %1096 = vmatpush2.msra.mxu0 0.0
    %1097 = vmatprep.subr.mxu0 0.0
    %1098 = vmatpush2.msra.mxu0 0.0
    %1099 = vmatprep.subr.mxu0 0.0
    %1100 = vmatpush2.msra.mxu0 0.0
    %1101 = vmatprep.subr.mxu0 0.0
    %1102 = vmatpush2.msra.mxu0 0.0
    %1103 = vmatprep.subr.mxu0 0.0
    %1104 = vmatpush2.msra.mxu0 0.0
    %1105 = vmatprep.subr.mxu0 0.0
    %1106 = vmatpush2.msra.mxu0 0.0
    %1107 = vmatprep.subr.mxu0 0.0
    %1108 = vmatpush2.msra.mxu0 0.0
    %1109 = vmatprep.subr.mxu0 0.0
    %1110 = vmatpush2.msra.mxu0 0.0
    %1111 = vmatprep.subr.mxu0 0.0
    %1112 = vmatpush2.msra.mxu0 0.0
    %1113 = vmatprep.subr.mxu0 0.0
    %1114 = vmatpush2.msra.mxu0 0.0
    %1115 = vmatprep.subr.mxu0 0.0
    %1116 = vmatpush2.msra.mxu0 0.0
    %1117 = vmatprep.subr.mxu0 0.0
    %1118 = vmatpush2.msra.mxu0 0.0
    %1119 = vmatprep.subr.mxu0 0.0
    %1120 = vmatpush2.msra.mxu0 0.0
    %1121 = vmatprep.subr.mxu0 0.0
    %1122 = vmatpush2.msra.mxu0 0.0
    %1123 = vmatprep.mubr.f32.mxu0 0.0
    %1124 = vmatmul.mubr.f32.gmra.mxu0 %v1057
    %v1125 = vpop.f32.mrf.mxu0
    %v1126 = vadd.f32 %v66, %v1125
    %v1127 = vpop.f32.mrf.mxu0
    %1128 = vdwg.mxu0
    %1130 = vrot.lane.b32.xlu0 %v1056, 32
    %v1131 = vpop.permute.xlu0 %1130
    %v1132 = vsel %vm147, %v1131, 0
    %1134 = vmatprep.subr.mxu0 0.0
    %1135 = vmatpush1.msra.mxu0 0.0
    %1136 = vmatprep.subr.mxu0 0.0
    %1137 = vmatpush1.msra.mxu0 0.0
    %1138 = vmatprep.subr.mxu0 0.0
    %1139 = vmatpush1.msra.mxu0 0.0
    %1140 = vmatprep.subr.mxu0 0.0
    %1141 = vmatpush1.msra.mxu0 0.0
    %1142 = vmatprep.subr.mxu0 0.0
    %1143 = vmatpush1.msra.mxu0 0.0
    %1144 = vmatprep.subr.mxu0 0.0
    %1145 = vmatpush1.msra.mxu0 0.0
    %1146 = vmatprep.subr.mxu0 0.0
    %1147 = vmatpush1.msra.mxu0 0.0
    %1148 = vmatprep.subr.mxu0 0.0
    %1149 = vmatpush1.msra.mxu0 0.0
    %1150 = vmatprep.subr.mxu0 0.0
    %1151 = vmatpush1.msra.mxu0 0.0
    %1152 = vmatprep.subr.mxu0 0.0
    %1153 = vmatpush1.msra.mxu0 0.0
    %1154 = vmatprep.subr.mxu0 0.0
    %1155 = vmatpush1.msra.mxu0 0.0
    %1156 = vmatprep.subr.mxu0 0.0
    %1157 = vmatpush1.msra.mxu0 0.0
    %1158 = vmatprep.subr.mxu0 0.0
    %1159 = vmatpush1.msra.mxu0 %v49
    %1160 = vmatprep.subr.mxu0 0.0
    %1161 = vmatpush1.msra.mxu0 %v48
    %1162 = vmatprep.subr.mxu0 0.0
    %1163 = vmatpush1.msra.mxu0 %v47
    %1164 = vmatprep.subr.mxu0 0.0
    %1165 = vmatpush1.msra.mxu0 %v46
    %1166 = vmatprep.subr.mxu0 0.0
    %1167 = vmatpush2.msra.mxu0 0.0
    %1168 = vmatprep.subr.mxu0 0.0
    %1169 = vmatpush2.msra.mxu0 0.0
    %1170 = vmatprep.subr.mxu0 0.0
    %1171 = vmatpush2.msra.mxu0 0.0
    %1172 = vmatprep.subr.mxu0 0.0
    %1173 = vmatpush2.msra.mxu0 0.0
    %1174 = vmatprep.subr.mxu0 0.0
    %1175 = vmatpush2.msra.mxu0 0.0
    %1176 = vmatprep.subr.mxu0 0.0
    %1177 = vmatpush2.msra.mxu0 0.0
    %1178 = vmatprep.subr.mxu0 0.0
    %1179 = vmatpush2.msra.mxu0 0.0
    %1180 = vmatprep.subr.mxu0 0.0
    %1181 = vmatpush2.msra.mxu0 0.0
    %1182 = vmatprep.subr.mxu0 0.0
    %1183 = vmatpush2.msra.mxu0 0.0
    %1184 = vmatprep.subr.mxu0 0.0
    %1185 = vmatpush2.msra.mxu0 0.0
    %1186 = vmatprep.subr.mxu0 0.0
    %1187 = vmatpush2.msra.mxu0 0.0
    %1188 = vmatprep.subr.mxu0 0.0
    %1189 = vmatpush2.msra.mxu0 0.0
    %1190 = vmatprep.subr.mxu0 0.0
    %1191 = vmatpush2.msra.mxu0 0.0
    %1192 = vmatprep.subr.mxu0 0.0
    %1193 = vmatpush2.msra.mxu0 0.0
    %1194 = vmatprep.subr.mxu0 0.0
    %1195 = vmatpush2.msra.mxu0 0.0
    %1196 = vmatprep.subr.mxu0 0.0
    %1197 = vmatpush2.msra.mxu0 0.0
    %1198 = vmatprep.mubr.f32.mxu0 0.0
    %1199 = vmatmul.mubr.f32.gmra.mxu0 %v1132
    %v1200 = vpop.f32.mrf.mxu0
    %v1201 = vadd.f32 0.0, %v1200
    %v1202 = vpop.f32.mrf.mxu0
    %1203 = vdwg.mxu0
    %v1204 = vadd.f32 %v1126, %v1201
    %v1205 = vxor.u32 %v1204, 2147483648
    %v1206 = vmul.f32 %v1205, 1.442695
    %v1207 = vpow.pop %v1206
    %v1208 = vadd.f32 %v1207, 1.0
    %v1209 = vrcp.pop %v1208
    %v1210 = vmul.f32 1.0, %v1209
    %v1211 = vtanh.pop %v1204
    %v1212 = vmul.f32 %v1210, %v951
    %1214 = vrot.lane.b32.xlu0 %v1211, 64
    %v1215 = vpop.permute.xlu0 %1214
    %v1217 = vmul.f32 %v1210, %v1215
    %1219 = vrot.lane.b32.xlu0 %v1217, 32
    %v1220 = vpop.permute.xlu0 %1219
    %v1222 = vadd.f32 %v1212, %v1220
    %v1223 = vtanh.pop %v1222
    %1225 = vrot.lane.b32.xlu0 %v1223, 64
    %v1226 = vpop.permute.xlu0 %1225
    %v1228 = vmul.f32 %v1210, %v1226
    %1230 = vrot.lane.b32.xlu0 %v1228, 32
    %v1231 = vpop.permute.xlu0 %1230
    %1233 = vst.msk [vmem:[#allocation2 + $0x6] sm:$0x3] %vm419, %v1231
    %1234 = vmatprep.subr.mxu0 0.0
    %1235 = vmatpush1.msra.mxu0 0.0
    %1236 = vmatprep.subr.mxu0 0.0
    %1237 = vmatpush1.msra.mxu0 0.0
    %1238 = vmatprep.subr.mxu0 0.0
    %1239 = vmatpush1.msra.mxu0 0.0
    %1240 = vmatprep.subr.mxu0 0.0
    %1241 = vmatpush1.msra.mxu0 0.0
    %1242 = vmatprep.subr.mxu0 0.0
    %1243 = vmatpush1.msra.mxu0 0.0
    %1244 = vmatprep.subr.mxu0 0.0
    %1245 = vmatpush1.msra.mxu0 0.0
    %1246 = vmatprep.subr.mxu0 0.0
    %1247 = vmatpush1.msra.mxu0 0.0
    %1248 = vmatprep.subr.mxu0 0.0
    %1249 = vmatpush1.msra.mxu0 0.0
    %1250 = vmatprep.subr.mxu0 0.0
    %1251 = vmatpush1.msra.mxu0 0.0
    %1252 = vmatprep.subr.mxu0 0.0
    %1253 = vmatpush1.msra.mxu0 0.0
    %1254 = vmatprep.subr.mxu0 0.0
    %1255 = vmatpush1.msra.mxu0 0.0
    %1256 = vmatprep.subr.mxu0 0.0
    %1257 = vmatpush1.msra.mxu0 0.0
    %1258 = vmatprep.subr.mxu0 0.0
    %1259 = vmatpush1.msra.mxu0 %v41
    %1260 = vmatprep.subr.mxu0 0.0
    %1261 = vmatpush1.msra.mxu0 %v40
    %1262 = vmatprep.subr.mxu0 0.0
    %1263 = vmatpush1.msra.mxu0 %v39
    %1264 = vmatprep.subr.mxu0 0.0
    %1265 = vmatpush1.msra.mxu0 %v38
    %1266 = vmatprep.subr.mxu0 0.0
    %1267 = vmatpush2.msra.mxu0 0.0
    %1268 = vmatprep.subr.mxu0 0.0
    %1269 = vmatpush2.msra.mxu0 0.0
    %1270 = vmatprep.subr.mxu0 0.0
    %1271 = vmatpush2.msra.mxu0 0.0
    %1272 = vmatprep.subr.mxu0 0.0
    %1273 = vmatpush2.msra.mxu0 0.0
    %1274 = vmatprep.subr.mxu0 0.0
    %1275 = vmatpush2.msra.mxu0 0.0
    %1276 = vmatprep.subr.mxu0 0.0
    %1277 = vmatpush2.msra.mxu0 0.0
    %1278 = vmatprep.subr.mxu0 0.0
    %1279 = vmatpush2.msra.mxu0 0.0
    %1280 = vmatprep.subr.mxu0 0.0
    %1281 = vmatpush2.msra.mxu0 0.0
    %1282 = vmatprep.subr.mxu0 0.0
    %1283 = vmatpush2.msra.mxu0 0.0
    %1284 = vmatprep.subr.mxu0 0.0
    %1285 = vmatpush2.msra.mxu0 0.0
    %1286 = vmatprep.subr.mxu0 0.0
    %1287 = vmatpush2.msra.mxu0 0.0
    %1288 = vmatprep.subr.mxu0 0.0
    %1289 = vmatpush2.msra.mxu0 0.0
    %1290 = vmatprep.subr.mxu0 0.0
    %1291 = vmatpush2.msra.mxu0 0.0
    %1292 = vmatprep.subr.mxu0 0.0
    %1293 = vmatpush2.msra.mxu0 0.0
    %1294 = vmatprep.subr.mxu0 0.0
    %1295 = vmatpush2.msra.mxu0 0.0
    %1296 = vmatprep.subr.mxu0 0.0
    %1297 = vmatpush2.msra.mxu0 0.0
    %1298 = vmatprep.mubr.f32.mxu0 0.0
    %1299 = vmatmul.mubr.f32.gmra.mxu0 %v1132
    %v1300 = vpop.f32.mrf.mxu0
    %v1301 = vadd.f32 %v61, %v1300
    %v1302 = vpop.f32.mrf.mxu0
    %1303 = vdwg.mxu0
    %v1304 = vxor.u32 %v1301, 2147483648
    %v1305 = vmul.f32 %v1304, 1.442695
    %v1306 = vpow.pop %v1305
    %v1307 = vadd.f32 %v1306, 1.0
    %v1308 = vrcp.pop %v1307
    %v1309 = vmul.f32 1.0, %v1308
    %v1310 = vtanh.pop %v1301
    %v1311 = vmul.f32 %v1309, %v1050
    %1313 = vrot.lane.b32.xlu0 %v1310, 64
    %v1314 = vpop.permute.xlu0 %1313
    %v1316 = vmul.f32 %v1309, %v1314
    %1318 = vrot.lane.b32.xlu0 %v1316, 32
    %v1319 = vpop.permute.xlu0 %1318
    %v1321 = vadd.f32 %v1311, %v1319
    %v1322 = vtanh.pop %v1321
    %1324 = vrot.lane.b32.xlu0 %v1322, 64
    %v1325 = vpop.permute.xlu0 %1324
    %v1327 = vmul.f32 %v1309, %v1325
    %v1328 = vsel %vm147, %v1231, 0
    %1330 = vmatprep.subr.mxu0 0.0
    %1331 = vmatpush1.msra.mxu0 0.0
    %1332 = vmatprep.subr.mxu0 0.0
    %1333 = vmatpush1.msra.mxu0 0.0
    %1334 = vmatprep.subr.mxu0 0.0
    %1335 = vmatpush1.msra.mxu0 0.0
    %1336 = vmatprep.subr.mxu0 0.0
    %1337 = vmatpush1.msra.mxu0 0.0
    %1338 = vmatprep.subr.mxu0 0.0
    %1339 = vmatpush1.msra.mxu0 0.0
    %1340 = vmatprep.subr.mxu0 0.0
    %1341 = vmatpush1.msra.mxu0 0.0
    %1342 = vmatprep.subr.mxu0 0.0
    %1343 = vmatpush1.msra.mxu0 0.0
    %1344 = vmatprep.subr.mxu0 0.0
    %1345 = vmatpush1.msra.mxu0 0.0
    %1346 = vmatprep.subr.mxu0 0.0
    %1347 = vmatpush1.msra.mxu0 0.0
    %1348 = vmatprep.subr.mxu0 0.0
    %1349 = vmatpush1.msra.mxu0 0.0
    %1350 = vmatprep.subr.mxu0 0.0
    %1351 = vmatpush1.msra.mxu0 0.0
    %1352 = vmatprep.subr.mxu0 0.0
    %1353 = vmatpush1.msra.mxu0 0.0
    %1354 = vmatprep.subr.mxu0 0.0
    %1355 = vmatpush1.msra.mxu0 %v45
    %1356 = vmatprep.subr.mxu0 0.0
    %1357 = vmatpush1.msra.mxu0 %v44
    %1358 = vmatprep.subr.mxu0 0.0
    %1359 = vmatpush1.msra.mxu0 %v43
    %1360 = vmatprep.subr.mxu0 0.0
    %1361 = vmatpush1.msra.mxu0 %v42
    %1362 = vmatprep.subr.mxu0 0.0
    %1363 = vmatpush2.msra.mxu0 0.0
    %1364 = vmatprep.subr.mxu0 0.0
    %1365 = vmatpush2.msra.mxu0 0.0
    %1366 = vmatprep.subr.mxu0 0.0
    %1367 = vmatpush2.msra.mxu0 0.0
    %1368 = vmatprep.subr.mxu0 0.0
    %1369 = vmatpush2.msra.mxu0 0.0
    %1370 = vmatprep.subr.mxu0 0.0
    %1371 = vmatpush2.msra.mxu0 0.0
    %1372 = vmatprep.subr.mxu0 0.0
    %1373 = vmatpush2.msra.mxu0 0.0
    %1374 = vmatprep.subr.mxu0 0.0
    %1375 = vmatpush2.msra.mxu0 0.0
    %1376 = vmatprep.subr.mxu0 0.0
    %1377 = vmatpush2.msra.mxu0 0.0
    %1378 = vmatprep.subr.mxu0 0.0
    %1379 = vmatpush2.msra.mxu0 0.0
    %1380 = vmatprep.subr.mxu0 0.0
    %1381 = vmatpush2.msra.mxu0 0.0
    %1382 = vmatprep.subr.mxu0 0.0
    %1383 = vmatpush2.msra.mxu0 0.0
    %1384 = vmatprep.subr.mxu0 0.0
    %1385 = vmatpush2.msra.mxu0 0.0
    %1386 = vmatprep.subr.mxu0 0.0
    %1387 = vmatpush2.msra.mxu0 0.0
    %1388 = vmatprep.subr.mxu0 0.0
    %1389 = vmatpush2.msra.mxu0 0.0
    %1390 = vmatprep.subr.mxu0 0.0
    %1391 = vmatpush2.msra.mxu0 0.0
    %1392 = vmatprep.subr.mxu0 0.0
    %1393 = vmatpush2.msra.mxu0 0.0
    %1394 = vmatprep.mubr.f32.mxu0 0.0
    %1395 = vmatmul.mubr.f32.gmra.mxu0 %v1328
    %v1396 = vpop.f32.mrf.mxu0
    %v1397 = vadd.f32 %v66, %v1396
    %v1398 = vpop.f32.mrf.mxu0
    %1399 = vdwg.mxu0
    %1401 = vrot.lane.b32.xlu0 %v1327, 32
    %v1402 = vpop.permute.xlu0 %1401
    %v1403 = vsel %vm147, %v1402, 0
    %1405 = vmatprep.subr.mxu0 0.0
    %1406 = vmatpush1.msra.mxu0 0.0
    %1407 = vmatprep.subr.mxu0 0.0
    %1408 = vmatpush1.msra.mxu0 0.0
    %1409 = vmatprep.subr.mxu0 0.0
    %1410 = vmatpush1.msra.mxu0 0.0
    %1411 = vmatprep.subr.mxu0 0.0
    %1412 = vmatpush1.msra.mxu0 0.0
    %1413 = vmatprep.subr.mxu0 0.0
    %1414 = vmatpush1.msra.mxu0 0.0
    %1415 = vmatprep.subr.mxu0 0.0
    %1416 = vmatpush1.msra.mxu0 0.0
    %1417 = vmatprep.subr.mxu0 0.0
    %1418 = vmatpush1.msra.mxu0 0.0
    %1419 = vmatprep.subr.mxu0 0.0
    %1420 = vmatpush1.msra.mxu0 0.0
    %1421 = vmatprep.subr.mxu0 0.0
    %1422 = vmatpush1.msra.mxu0 0.0
    %1423 = vmatprep.subr.mxu0 0.0
    %1424 = vmatpush1.msra.mxu0 0.0
    %1425 = vmatprep.subr.mxu0 0.0
    %1426 = vmatpush1.msra.mxu0 0.0
    %1427 = vmatprep.subr.mxu0 0.0
    %1428 = vmatpush1.msra.mxu0 0.0
    %1429 = vmatprep.subr.mxu0 0.0
    %1430 = vmatpush1.msra.mxu0 %v49
    %1431 = vmatprep.subr.mxu0 0.0
    %1432 = vmatpush1.msra.mxu0 %v48
    %1433 = vmatprep.subr.mxu0 0.0
    %1434 = vmatpush1.msra.mxu0 %v47
    %1435 = vmatprep.subr.mxu0 0.0
    %1436 = vmatpush1.msra.mxu0 %v46
    %1437 = vmatprep.subr.mxu0 0.0
    %1438 = vmatpush2.msra.mxu0 0.0
    %1439 = vmatprep.subr.mxu0 0.0
    %1440 = vmatpush2.msra.mxu0 0.0
    %1441 = vmatprep.subr.mxu0 0.0
    %1442 = vmatpush2.msra.mxu0 0.0
    %1443 = vmatprep.subr.mxu0 0.0
    %1444 = vmatpush2.msra.mxu0 0.0
    %1445 = vmatprep.subr.mxu0 0.0
    %1446 = vmatpush2.msra.mxu0 0.0
    %1447 = vmatprep.subr.mxu0 0.0
    %1448 = vmatpush2.msra.mxu0 0.0
    %1449 = vmatprep.subr.mxu0 0.0
    %1450 = vmatpush2.msra.mxu0 0.0
    %1451 = vmatprep.subr.mxu0 0.0
    %1452 = vmatpush2.msra.mxu0 0.0
    %1453 = vmatprep.subr.mxu0 0.0
    %1454 = vmatpush2.msra.mxu0 0.0
    %1455 = vmatprep.subr.mxu0 0.0
    %1456 = vmatpush2.msra.mxu0 0.0
    %1457 = vmatprep.subr.mxu0 0.0
    %1458 = vmatpush2.msra.mxu0 0.0
    %1459 = vmatprep.subr.mxu0 0.0
    %1460 = vmatpush2.msra.mxu0 0.0
    %1461 = vmatprep.subr.mxu0 0.0
    %1462 = vmatpush2.msra.mxu0 0.0
    %1463 = vmatprep.subr.mxu0 0.0
    %1464 = vmatpush2.msra.mxu0 0.0
    %1465 = vmatprep.subr.mxu0 0.0
    %1466 = vmatpush2.msra.mxu0 0.0
    %1467 = vmatprep.subr.mxu0 0.0
    %1468 = vmatpush2.msra.mxu0 0.0
    %1469 = vmatprep.mubr.f32.mxu0 0.0
    %1470 = vmatmul.mubr.f32.gmra.mxu0 %v1403
    %v1471 = vpop.f32.mrf.mxu0
    %v1472 = vadd.f32 0.0, %v1471
    %v1473 = vpop.f32.mrf.mxu0
    %1474 = vdwg.mxu0
    %v1475 = vadd.f32 %v1397, %v1472
    %v1476 = vxor.u32 %v1475, 2147483648
    %v1477 = vmul.f32 %v1476, 1.442695
    %v1478 = vpow.pop %v1477
    %v1479 = vadd.f32 %v1478, 1.0
    %v1480 = vrcp.pop %v1479
    %v1481 = vmul.f32 1.0, %v1480
    %v1482 = vtanh.pop %v1475
    %v1483 = vmul.f32 %v1481, %v1222
    %1485 = vrot.lane.b32.xlu0 %v1482, 64
    %v1486 = vpop.permute.xlu0 %1485
    %v1488 = vmul.f32 %v1481, %v1486
    %1490 = vrot.lane.b32.xlu0 %v1488, 32
    %v1491 = vpop.permute.xlu0 %1490
    %v1493 = vadd.f32 %v1483, %v1491
    %v1494 = vtanh.pop %v1493
    %1496 = vrot.lane.b32.xlu0 %v1494, 64
    %v1497 = vpop.permute.xlu0 %1496
    %v1499 = vmul.f32 %v1481, %v1497
    %1501 = vrot.lane.b32.xlu0 %v1499, 32
    %v1502 = vpop.permute.xlu0 %1501
    %1504 = vst.msk [vmem:[#allocation2 + $0x8] sm:$0x3] %vm419, %v1502
    %1505 = vmatprep.subr.mxu0 0.0
    %1506 = vmatpush1.msra.mxu0 0.0
    %1507 = vmatprep.subr.mxu0 0.0
    %1508 = vmatpush1.msra.mxu0 0.0
    %1509 = vmatprep.subr.mxu0 0.0
    %1510 = vmatpush1.msra.mxu0 0.0
    %1511 = vmatprep.subr.mxu0 0.0
    %1512 = vmatpush1.msra.mxu0 0.0
    %1513 = vmatprep.subr.mxu0 0.0
    %1514 = vmatpush1.msra.mxu0 0.0
    %1515 = vmatprep.subr.mxu0 0.0
    %1516 = vmatpush1.msra.mxu0 0.0
    %1517 = vmatprep.subr.mxu0 0.0
    %1518 = vmatpush1.msra.mxu0 0.0
    %1519 = vmatprep.subr.mxu0 0.0
    %1520 = vmatpush1.msra.mxu0 0.0
    %1521 = vmatprep.subr.mxu0 0.0
    %1522 = vmatpush1.msra.mxu0 0.0
    %1523 = vmatprep.subr.mxu0 0.0
    %1524 = vmatpush1.msra.mxu0 0.0
    %1525 = vmatprep.subr.mxu0 0.0
    %1526 = vmatpush1.msra.mxu0 0.0
    %1527 = vmatprep.subr.mxu0 0.0
    %1528 = vmatpush1.msra.mxu0 0.0
    %1529 = vmatprep.subr.mxu0 0.0
    %1530 = vmatpush1.msra.mxu0 %v41
    %1531 = vmatprep.subr.mxu0 0.0
    %1532 = vmatpush1.msra.mxu0 %v40
    %1533 = vmatprep.subr.mxu0 0.0
    %1534 = vmatpush1.msra.mxu0 %v39
    %1535 = vmatprep.subr.mxu0 0.0
    %1536 = vmatpush1.msra.mxu0 %v38
    %1537 = vmatprep.subr.mxu0 0.0
    %1538 = vmatpush2.msra.mxu0 0.0
    %1539 = vmatprep.subr.mxu0 0.0
    %1540 = vmatpush2.msra.mxu0 0.0
    %1541 = vmatprep.subr.mxu0 0.0
    %1542 = vmatpush2.msra.mxu0 0.0
    %1543 = vmatprep.subr.mxu0 0.0
    %1544 = vmatpush2.msra.mxu0 0.0
    %1545 = vmatprep.subr.mxu0 0.0
    %1546 = vmatpush2.msra.mxu0 0.0
    %1547 = vmatprep.subr.mxu0 0.0
    %1548 = vmatpush2.msra.mxu0 0.0
    %1549 = vmatprep.subr.mxu0 0.0
    %1550 = vmatpush2.msra.mxu0 0.0
    %1551 = vmatprep.subr.mxu0 0.0
    %1552 = vmatpush2.msra.mxu0 0.0
    %1553 = vmatprep.subr.mxu0 0.0
    %1554 = vmatpush2.msra.mxu0 0.0
    %1555 = vmatprep.subr.mxu0 0.0
    %1556 = vmatpush2.msra.mxu0 0.0
    %1557 = vmatprep.subr.mxu0 0.0
    %1558 = vmatpush2.msra.mxu0 0.0
    %1559 = vmatprep.subr.mxu0 0.0
    %1560 = vmatpush2.msra.mxu0 0.0
    %1561 = vmatprep.subr.mxu0 0.0
    %1562 = vmatpush2.msra.mxu0 0.0
    %1563 = vmatprep.subr.mxu0 0.0
    %1564 = vmatpush2.msra.mxu0 0.0
    %1565 = vmatprep.subr.mxu0 0.0
    %1566 = vmatpush2.msra.mxu0 0.0
    %1567 = vmatprep.subr.mxu0 0.0
    %1568 = vmatpush2.msra.mxu0 0.0
    %1569 = vmatprep.mubr.f32.mxu0 0.0
    %1570 = vmatmul.mubr.f32.gmra.mxu0 %v1403
    %v1571 = vpop.f32.mrf.mxu0
    %v1572 = vadd.f32 %v61, %v1571
    %v1573 = vpop.f32.mrf.mxu0
    %1574 = vdwg.mxu0
    %v1575 = vxor.u32 %v1572, 2147483648
    %v1576 = vmul.f32 %v1575, 1.442695
    %v1577 = vpow.pop %v1576
    %v1578 = vadd.f32 %v1577, 1.0
    %v1579 = vrcp.pop %v1578
    %v1580 = vmul.f32 1.0, %v1579
    %v1581 = vtanh.pop %v1572
    %v1582 = vmul.f32 %v1580, %v1321
    %1584 = vrot.lane.b32.xlu0 %v1581, 64
    %v1585 = vpop.permute.xlu0 %1584
    %v1587 = vmul.f32 %v1580, %v1585
    %1589 = vrot.lane.b32.xlu0 %v1587, 32
    %v1590 = vpop.permute.xlu0 %1589
    %v1592 = vadd.f32 %v1582, %v1590
    %v1593 = vtanh.pop %v1592
    %1595 = vrot.lane.b32.xlu0 %v1593, 64
    %v1596 = vpop.permute.xlu0 %1595
    %v1598 = vmul.f32 %v1580, %v1596
    %v1599 = vsel %vm147, %v1502, 0
    %1601 = vmatprep.subr.mxu0 0.0
    %1602 = vmatpush1.msra.mxu0 0.0
    %1603 = vmatprep.subr.mxu0 0.0
    %1604 = vmatpush1.msra.mxu0 0.0
    %1605 = vmatprep.subr.mxu0 0.0
    %1606 = vmatpush1.msra.mxu0 0.0
    %1607 = vmatprep.subr.mxu0 0.0
    %1608 = vmatpush1.msra.mxu0 0.0
    %1609 = vmatprep.subr.mxu0 0.0
    %1610 = vmatpush1.msra.mxu0 0.0
    %1611 = vmatprep.subr.mxu0 0.0
    %1612 = vmatpush1.msra.mxu0 0.0
    %1613 = vmatprep.subr.mxu0 0.0
    %1614 = vmatpush1.msra.mxu0 0.0
    %1615 = vmatprep.subr.mxu0 0.0
    %1616 = vmatpush1.msra.mxu0 0.0
    %1617 = vmatprep.subr.mxu0 0.0
    %1618 = vmatpush1.msra.mxu0 0.0
    %1619 = vmatprep.subr.mxu0 0.0
    %1620 = vmatpush1.msra.mxu0 0.0
    %1621 = vmatprep.subr.mxu0 0.0
    %1622 = vmatpush1.msra.mxu0 0.0
    %1623 = vmatprep.subr.mxu0 0.0
    %1624 = vmatpush1.msra.mxu0 0.0
    %1625 = vmatprep.subr.mxu0 0.0
    %1626 = vmatpush1.msra.mxu0 %v45
    %1627 = vmatprep.subr.mxu0 0.0
    %1628 = vmatpush1.msra.mxu0 %v44
    %1629 = vmatprep.subr.mxu0 0.0
    %1630 = vmatpush1.msra.mxu0 %v43
    %1631 = vmatprep.subr.mxu0 0.0
    %1632 = vmatpush1.msra.mxu0 %v42
    %1633 = vmatprep.subr.mxu0 0.0
    %1634 = vmatpush2.msra.mxu0 0.0
    %1635 = vmatprep.subr.mxu0 0.0
    %1636 = vmatpush2.msra.mxu0 0.0
    %1637 = vmatprep.subr.mxu0 0.0
    %1638 = vmatpush2.msra.mxu0 0.0
    %1639 = vmatprep.subr.mxu0 0.0
    %1640 = vmatpush2.msra.mxu0 0.0
    %1641 = vmatprep.subr.mxu0 0.0
    %1642 = vmatpush2.msra.mxu0 0.0
    %1643 = vmatprep.subr.mxu0 0.0
    %1644 = vmatpush2.msra.mxu0 0.0
    %1645 = vmatprep.subr.mxu0 0.0
    %1646 = vmatpush2.msra.mxu0 0.0
    %1647 = vmatprep.subr.mxu0 0.0
    %1648 = vmatpush2.msra.mxu0 0.0
    %1649 = vmatprep.subr.mxu0 0.0
    %1650 = vmatpush2.msra.mxu0 0.0
    %1651 = vmatprep.subr.mxu0 0.0
    %1652 = vmatpush2.msra.mxu0 0.0
    %1653 = vmatprep.subr.mxu0 0.0
    %1654 = vmatpush2.msra.mxu0 0.0
    %1655 = vmatprep.subr.mxu0 0.0
    %1656 = vmatpush2.msra.mxu0 0.0
    %1657 = vmatprep.subr.mxu0 0.0
    %1658 = vmatpush2.msra.mxu0 0.0
    %1659 = vmatprep.subr.mxu0 0.0
    %1660 = vmatpush2.msra.mxu0 0.0
    %1661 = vmatprep.subr.mxu0 0.0
    %1662 = vmatpush2.msra.mxu0 0.0
    %1663 = vmatprep.subr.mxu0 0.0
    %1664 = vmatpush2.msra.mxu0 0.0
    %1665 = vmatprep.mubr.f32.mxu0 0.0
    %1666 = vmatmul.mubr.f32.gmra.mxu0 %v1599
    %v1667 = vpop.f32.mrf.mxu0
    %v1668 = vadd.f32 %v66, %v1667
    %v1669 = vpop.f32.mrf.mxu0
    %1670 = vdwg.mxu0
    %1672 = vrot.lane.b32.xlu0 %v1598, 32
    %v1673 = vpop.permute.xlu0 %1672
    %v1674 = vsel %vm147, %v1673, 0
    %1676 = vmatprep.subr.mxu0 0.0
    %1677 = vmatpush1.msra.mxu0 0.0
    %1678 = vmatprep.subr.mxu0 0.0
    %1679 = vmatpush1.msra.mxu0 0.0
    %1680 = vmatprep.subr.mxu0 0.0
    %1681 = vmatpush1.msra.mxu0 0.0
    %1682 = vmatprep.subr.mxu0 0.0
    %1683 = vmatpush1.msra.mxu0 0.0
    %1684 = vmatprep.subr.mxu0 0.0
    %1685 = vmatpush1.msra.mxu0 0.0
    %1686 = vmatprep.subr.mxu0 0.0
    %1687 = vmatpush1.msra.mxu0 0.0
    %1688 = vmatprep.subr.mxu0 0.0
    %1689 = vmatpush1.msra.mxu0 0.0
    %1690 = vmatprep.subr.mxu0 0.0
    %1691 = vmatpush1.msra.mxu0 0.0
    %1692 = vmatprep.subr.mxu0 0.0
    %1693 = vmatpush1.msra.mxu0 0.0
    %1694 = vmatprep.subr.mxu0 0.0
    %1695 = vmatpush1.msra.mxu0 0.0
    %1696 = vmatprep.subr.mxu0 0.0
    %1697 = vmatpush1.msra.mxu0 0.0
    %1698 = vmatprep.subr.mxu0 0.0
    %1699 = vmatpush1.msra.mxu0 0.0
    %1700 = vmatprep.subr.mxu0 0.0
    %1701 = vmatpush1.msra.mxu0 %v49
    %1702 = vmatprep.subr.mxu0 0.0
    %1703 = vmatpush1.msra.mxu0 %v48
    %1704 = vmatprep.subr.mxu0 0.0
    %1705 = vmatpush1.msra.mxu0 %v47
    %1706 = vmatprep.subr.mxu0 0.0
    %1707 = vmatpush1.msra.mxu0 %v46
    %1708 = vmatprep.subr.mxu0 0.0
    %1709 = vmatpush2.msra.mxu0 0.0
    %1710 = vmatprep.subr.mxu0 0.0
    %1711 = vmatpush2.msra.mxu0 0.0
    %1712 = vmatprep.subr.mxu0 0.0
    %1713 = vmatpush2.msra.mxu0 0.0
    %1714 = vmatprep.subr.mxu0 0.0
    %1715 = vmatpush2.msra.mxu0 0.0
    %1716 = vmatprep.subr.mxu0 0.0
    %1717 = vmatpush2.msra.mxu0 0.0
    %1718 = vmatprep.subr.mxu0 0.0
    %1719 = vmatpush2.msra.mxu0 0.0
    %1720 = vmatprep.subr.mxu0 0.0
    %1721 = vmatpush2.msra.mxu0 0.0
    %1722 = vmatprep.subr.mxu0 0.0
    %1723 = vmatpush2.msra.mxu0 0.0
    %1724 = vmatprep.subr.mxu0 0.0
    %1725 = vmatpush2.msra.mxu0 0.0
    %1726 = vmatprep.subr.mxu0 0.0
    %1727 = vmatpush2.msra.mxu0 0.0
    %1728 = vmatprep.subr.mxu0 0.0
    %1729 = vmatpush2.msra.mxu0 0.0
    %1730 = vmatprep.subr.mxu0 0.0
    %1731 = vmatpush2.msra.mxu0 0.0
    %1732 = vmatprep.subr.mxu0 0.0
    %1733 = vmatpush2.msra.mxu0 0.0
    %1734 = vmatprep.subr.mxu0 0.0
    %1735 = vmatpush2.msra.mxu0 0.0
    %1736 = vmatprep.subr.mxu0 0.0
    %1737 = vmatpush2.msra.mxu0 0.0
    %1738 = vmatprep.subr.mxu0 0.0
    %1739 = vmatpush2.msra.mxu0 0.0
    %1740 = vmatprep.mubr.f32.mxu0 0.0
    %1741 = vmatmul.mubr.f32.gmra.mxu0 %v1674
    %v1742 = vpop.f32.mrf.mxu0
    %v1743 = vadd.f32 0.0, %v1742
    %v1744 = vpop.f32.mrf.mxu0
    %1745 = vdwg.mxu0
    %v1746 = vadd.f32 %v1668, %v1743
    %v1747 = vxor.u32 %v1746, 2147483648
    %v1748 = vmul.f32 %v1747, 1.442695
    %v1749 = vpow.pop %v1748
    %v1750 = vadd.f32 %v1749, 1.0
    %v1751 = vrcp.pop %v1750
    %v1752 = vmul.f32 1.0, %v1751
    %v1753 = vtanh.pop %v1746
    %v1754 = vmul.f32 %v1752, %v1493
    %1756 = vrot.lane.b32.xlu0 %v1753, 64
    %v1757 = vpop.permute.xlu0 %1756
    %v1759 = vmul.f32 %v1752, %v1757
    %1761 = vrot.lane.b32.xlu0 %v1759, 32
    %v1762 = vpop.permute.xlu0 %1761
    %v1764 = vadd.f32 %v1754, %v1762
    %v1765 = vtanh.pop %v1764
    %1767 = vrot.lane.b32.xlu0 %v1765, 64
    %v1768 = vpop.permute.xlu0 %1767
    %v1770 = vmul.f32 %v1752, %v1768
    %1772 = vrot.lane.b32.xlu0 %v1770, 32
    %v1773 = vpop.permute.xlu0 %1772
    %1775 = vst.msk [vmem:[#allocation2 + $0xa] sm:$0x3] %vm419, %v1773
    %1776 = vmatprep.subr.mxu0 0.0
    %1777 = vmatpush1.msra.mxu0 0.0
    %1778 = vmatprep.subr.mxu0 0.0
    %1779 = vmatpush1.msra.mxu0 0.0
    %1780 = vmatprep.subr.mxu0 0.0
    %1781 = vmatpush1.msra.mxu0 0.0
    %1782 = vmatprep.subr.mxu0 0.0
    %1783 = vmatpush1.msra.mxu0 0.0
    %1784 = vmatprep.subr.mxu0 0.0
    %1785 = vmatpush1.msra.mxu0 0.0
    %1786 = vmatprep.subr.mxu0 0.0
    %1787 = vmatpush1.msra.mxu0 0.0
    %1788 = vmatprep.subr.mxu0 0.0
    %1789 = vmatpush1.msra.mxu0 0.0
    %1790 = vmatprep.subr.mxu0 0.0
    %1791 = vmatpush1.msra.mxu0 0.0
    %1792 = vmatprep.subr.mxu0 0.0
    %1793 = vmatpush1.msra.mxu0 0.0
    %1794 = vmatprep.subr.mxu0 0.0
    %1795 = vmatpush1.msra.mxu0 0.0
    %1796 = vmatprep.subr.mxu0 0.0
    %1797 = vmatpush1.msra.mxu0 0.0
    %1798 = vmatprep.subr.mxu0 0.0
    %1799 = vmatpush1.msra.mxu0 0.0
    %1800 = vmatprep.subr.mxu0 0.0
    %1801 = vmatpush1.msra.mxu0 %v41
    %1802 = vmatprep.subr.mxu0 0.0
    %1803 = vmatpush1.msra.mxu0 %v40
    %1804 = vmatprep.subr.mxu0 0.0
    %1805 = vmatpush1.msra.mxu0 %v39
    %1806 = vmatprep.subr.mxu0 0.0
    %1807 = vmatpush1.msra.mxu0 %v38
    %1808 = vmatprep.subr.mxu0 0.0
    %1809 = vmatpush2.msra.mxu0 0.0
    %1810 = vmatprep.subr.mxu0 0.0
    %1811 = vmatpush2.msra.mxu0 0.0
    %1812 = vmatprep.subr.mxu0 0.0
    %1813 = vmatpush2.msra.mxu0 0.0
    %1814 = vmatprep.subr.mxu0 0.0
    %1815 = vmatpush2.msra.mxu0 0.0
    %1816 = vmatprep.subr.mxu0 0.0
    %1817 = vmatpush2.msra.mxu0 0.0
    %1818 = vmatprep.subr.mxu0 0.0
    %1819 = vmatpush2.msra.mxu0 0.0
    %1820 = vmatprep.subr.mxu0 0.0
    %1821 = vmatpush2.msra.mxu0 0.0
    %1822 = vmatprep.subr.mxu0 0.0
    %1823 = vmatpush2.msra.mxu0 0.0
    %1824 = vmatprep.subr.mxu0 0.0
    %1825 = vmatpush2.msra.mxu0 0.0
    %1826 = vmatprep.subr.mxu0 0.0
    %1827 = vmatpush2.msra.mxu0 0.0
    %1828 = vmatprep.subr.mxu0 0.0
    %1829 = vmatpush2.msra.mxu0 0.0
    %1830 = vmatprep.subr.mxu0 0.0
    %1831 = vmatpush2.msra.mxu0 0.0
    %1832 = vmatprep.subr.mxu0 0.0
    %1833 = vmatpush2.msra.mxu0 0.0
    %1834 = vmatprep.subr.mxu0 0.0
    %1835 = vmatpush2.msra.mxu0 0.0
    %1836 = vmatprep.subr.mxu0 0.0
    %1837 = vmatpush2.msra.mxu0 0.0
    %1838 = vmatprep.subr.mxu0 0.0
    %1839 = vmatpush2.msra.mxu0 0.0
    %1840 = vmatprep.mubr.f32.mxu0 0.0
    %1841 = vmatmul.mubr.f32.gmra.mxu0 %v1674
    %v1842 = vpop.f32.mrf.mxu0
    %v1843 = vadd.f32 %v61, %v1842
    %v1844 = vpop.f32.mrf.mxu0
    %1845 = vdwg.mxu0
    %v1846 = vxor.u32 %v1843, 2147483648
    %v1847 = vmul.f32 %v1846, 1.442695
    %v1848 = vpow.pop %v1847
    %v1849 = vadd.f32 %v1848, 1.0
    %v1850 = vrcp.pop %v1849
    %v1851 = vmul.f32 1.0, %v1850
    %v1852 = vtanh.pop %v1843
    %v1853 = vmul.f32 %v1851, %v1592
    %1855 = vrot.lane.b32.xlu0 %v1852, 64
    %v1856 = vpop.permute.xlu0 %1855
    %v1858 = vmul.f32 %v1851, %v1856
    %1860 = vrot.lane.b32.xlu0 %v1858, 32
    %v1861 = vpop.permute.xlu0 %1860
    %v1863 = vadd.f32 %v1853, %v1861
    %v1864 = vtanh.pop %v1863
    %1866 = vrot.lane.b32.xlu0 %v1864, 64
    %v1867 = vpop.permute.xlu0 %1866
    %v1869 = vmul.f32 %v1851, %v1867
    %v1870 = vsel %vm147, %v1773, 0
    %1872 = vmatprep.subr.mxu0 0.0
    %1873 = vmatpush1.msra.mxu0 0.0
    %1874 = vmatprep.subr.mxu0 0.0
    %1875 = vmatpush1.msra.mxu0 0.0
    %1876 = vmatprep.subr.mxu0 0.0
    %1877 = vmatpush1.msra.mxu0 0.0
    %1878 = vmatprep.subr.mxu0 0.0
    %1879 = vmatpush1.msra.mxu0 0.0
    %1880 = vmatprep.subr.mxu0 0.0
    %1881 = vmatpush1.msra.mxu0 0.0
    %1882 = vmatprep.subr.mxu0 0.0
    %1883 = vmatpush1.msra.mxu0 0.0
    %1884 = vmatprep.subr.mxu0 0.0
    %1885 = vmatpush1.msra.mxu0 0.0
    %1886 = vmatprep.subr.mxu0 0.0
    %1887 = vmatpush1.msra.mxu0 0.0
    %1888 = vmatprep.subr.mxu0 0.0
    %1889 = vmatpush1.msra.mxu0 0.0
    %1890 = vmatprep.subr.mxu0 0.0
    %1891 = vmatpush1.msra.mxu0 0.0
    %1892 = vmatprep.subr.mxu0 0.0
    %1893 = vmatpush1.msra.mxu0 0.0
    %1894 = vmatprep.subr.mxu0 0.0
    %1895 = vmatpush1.msra.mxu0 0.0
    %1896 = vmatprep.subr.mxu0 0.0
    %1897 = vmatpush1.msra.mxu0 %v45
    %1898 = vmatprep.subr.mxu0 0.0
    %1899 = vmatpush1.msra.mxu0 %v44
    %1900 = vmatprep.subr.mxu0 0.0
    %1901 = vmatpush1.msra.mxu0 %v43
    %1902 = vmatprep.subr.mxu0 0.0
    %1903 = vmatpush1.msra.mxu0 %v42
    %1904 = vmatprep.subr.mxu0 0.0
    %1905 = vmatpush2.msra.mxu0 0.0
    %1906 = vmatprep.subr.mxu0 0.0
    %1907 = vmatpush2.msra.mxu0 0.0
    %1908 = vmatprep.subr.mxu0 0.0
    %1909 = vmatpush2.msra.mxu0 0.0
    %1910 = vmatprep.subr.mxu0 0.0
    %1911 = vmatpush2.msra.mxu0 0.0
    %1912 = vmatprep.subr.mxu0 0.0
    %1913 = vmatpush2.msra.mxu0 0.0
    %1914 = vmatprep.subr.mxu0 0.0
    %1915 = vmatpush2.msra.mxu0 0.0
    %1916 = vmatprep.subr.mxu0 0.0
    %1917 = vmatpush2.msra.mxu0 0.0
    %1918 = vmatprep.subr.mxu0 0.0
    %1919 = vmatpush2.msra.mxu0 0.0
    %1920 = vmatprep.subr.mxu0 0.0
    %1921 = vmatpush2.msra.mxu0 0.0
    %1922 = vmatprep.subr.mxu0 0.0
    %1923 = vmatpush2.msra.mxu0 0.0
    %1924 = vmatprep.subr.mxu0 0.0
    %1925 = vmatpush2.msra.mxu0 0.0
    %1926 = vmatprep.subr.mxu0 0.0
    %1927 = vmatpush2.msra.mxu0 0.0
    %1928 = vmatprep.subr.mxu0 0.0
    %1929 = vmatpush2.msra.mxu0 0.0
    %1930 = vmatprep.subr.mxu0 0.0
    %1931 = vmatpush2.msra.mxu0 0.0
    %1932 = vmatprep.subr.mxu0 0.0
    %1933 = vmatpush2.msra.mxu0 0.0
    %1934 = vmatprep.subr.mxu0 0.0
    %1935 = vmatpush2.msra.mxu0 0.0
    %1936 = vmatprep.mubr.f32.mxu0 0.0
    %1937 = vmatmul.mubr.f32.gmra.mxu0 %v1870
    %v1938 = vpop.f32.mrf.mxu0
    %v1939 = vadd.f32 %v66, %v1938
    %v1940 = vpop.f32.mrf.mxu0
    %1941 = vdwg.mxu0
    %1943 = vrot.lane.b32.xlu0 %v1869, 32
    %v1944 = vpop.permute.xlu0 %1943
    %v1945 = vsel %vm147, %v1944, 0
    %1947 = vmatprep.subr.mxu0 0.0
    %1948 = vmatpush1.msra.mxu0 0.0
    %1949 = vmatprep.subr.mxu0 0.0
    %1950 = vmatpush1.msra.mxu0 0.0
    %1951 = vmatprep.subr.mxu0 0.0
    %1952 = vmatpush1.msra.mxu0 0.0
    %1953 = vmatprep.subr.mxu0 0.0
    %1954 = vmatpush1.msra.mxu0 0.0
    %1955 = vmatprep.subr.mxu0 0.0
    %1956 = vmatpush1.msra.mxu0 0.0
    %1957 = vmatprep.subr.mxu0 0.0
    %1958 = vmatpush1.msra.mxu0 0.0
    %1959 = vmatprep.subr.mxu0 0.0
    %1960 = vmatpush1.msra.mxu0 0.0
    %1961 = vmatprep.subr.mxu0 0.0
    %1962 = vmatpush1.msra.mxu0 0.0
    %1963 = vmatprep.subr.mxu0 0.0
    %1964 = vmatpush1.msra.mxu0 0.0
    %1965 = vmatprep.subr.mxu0 0.0
    %1966 = vmatpush1.msra.mxu0 0.0
    %1967 = vmatprep.subr.mxu0 0.0
    %1968 = vmatpush1.msra.mxu0 0.0
    %1969 = vmatprep.subr.mxu0 0.0
    %1970 = vmatpush1.msra.mxu0 0.0
    %1971 = vmatprep.subr.mxu0 0.0
    %1972 = vmatpush1.msra.mxu0 %v49
    %1973 = vmatprep.subr.mxu0 0.0
    %1974 = vmatpush1.msra.mxu0 %v48
    %1975 = vmatprep.subr.mxu0 0.0
    %1976 = vmatpush1.msra.mxu0 %v47
    %1977 = vmatprep.subr.mxu0 0.0
    %1978 = vmatpush1.msra.mxu0 %v46
    %1979 = vmatprep.subr.mxu0 0.0
    %1980 = vmatpush2.msra.mxu0 0.0
    %1981 = vmatprep.subr.mxu0 0.0
    %1982 = vmatpush2.msra.mxu0 0.0
    %1983 = vmatprep.subr.mxu0 0.0
    %1984 = vmatpush2.msra.mxu0 0.0
    %1985 = vmatprep.subr.mxu0 0.0
    %1986 = vmatpush2.msra.mxu0 0.0
    %1987 = vmatprep.subr.mxu0 0.0
    %1988 = vmatpush2.msra.mxu0 0.0
    %1989 = vmatprep.subr.mxu0 0.0
    %1990 = vmatpush2.msra.mxu0 0.0
    %1991 = vmatprep.subr.mxu0 0.0
    %1992 = vmatpush2.msra.mxu0 0.0
    %1993 = vmatprep.subr.mxu0 0.0
    %1994 = vmatpush2.msra.mxu0 0.0
    %1995 = vmatprep.subr.mxu0 0.0
    %1996 = vmatpush2.msra.mxu0 0.0
    %1997 = vmatprep.subr.mxu0 0.0
    %1998 = vmatpush2.msra.mxu0 0.0
    %1999 = vmatprep.subr.mxu0 0.0
    %2000 = vmatpush2.msra.mxu0 0.0
    %2001 = vmatprep.subr.mxu0 0.0
    %2002 = vmatpush2.msra.mxu0 0.0
    %2003 = vmatprep.subr.mxu0 0.0
    %2004 = vmatpush2.msra.mxu0 0.0
    %2005 = vmatprep.subr.mxu0 0.0
    %2006 = vmatpush2.msra.mxu0 0.0
    %2007 = vmatprep.subr.mxu0 0.0
    %2008 = vmatpush2.msra.mxu0 0.0
    %2009 = vmatprep.subr.mxu0 0.0
    %2010 = vmatpush2.msra.mxu0 0.0
    %2011 = vmatprep.mubr.f32.mxu0 0.0
    %2012 = vmatmul.mubr.f32.gmra.mxu0 %v1945
    %v2013 = vpop.f32.mrf.mxu0
    %v2014 = vadd.f32 0.0, %v2013
    %v2015 = vpop.f32.mrf.mxu0
    %2016 = vdwg.mxu0
    %v2017 = vadd.f32 %v1939, %v2014
    %v2018 = vxor.u32 %v2017, 2147483648
    %v2019 = vmul.f32 %v2018, 1.442695
    %v2020 = vpow.pop %v2019
    %v2021 = vadd.f32 %v2020, 1.0
    %v2022 = vrcp.pop %v2021
    %v2023 = vmul.f32 1.0, %v2022
    %v2024 = vtanh.pop %v2017
    %v2025 = vmul.f32 %v2023, %v1764
    %2027 = vrot.lane.b32.xlu0 %v2024, 64
    %v2028 = vpop.permute.xlu0 %2027
    %v2030 = vmul.f32 %v2023, %v2028
    %2032 = vrot.lane.b32.xlu0 %v2030, 32
    %v2033 = vpop.permute.xlu0 %2032
    %v2035 = vadd.f32 %v2025, %v2033
    %v2036 = vtanh.pop %v2035
    %2038 = vrot.lane.b32.xlu0 %v2036, 64
    %v2039 = vpop.permute.xlu0 %2038
    %v2041 = vmul.f32 %v2023, %v2039
    %2043 = vrot.lane.b32.xlu0 %v2041, 32
    %v2044 = vpop.permute.xlu0 %2043
    %2046 = vst.msk [vmem:[#allocation2 + $0xc] sm:$0x3] %vm419, %v2044
    %2047 = vmatprep.subr.mxu0 0.0
    %2048 = vmatpush1.msra.mxu0 0.0
    %2049 = vmatprep.subr.mxu0 0.0
    %2050 = vmatpush1.msra.mxu0 0.0
    %2051 = vmatprep.subr.mxu0 0.0
    %2052 = vmatpush1.msra.mxu0 0.0
    %2053 = vmatprep.subr.mxu0 0.0
    %2054 = vmatpush1.msra.mxu0 0.0
    %2055 = vmatprep.subr.mxu0 0.0
    %2056 = vmatpush1.msra.mxu0 0.0
    %2057 = vmatprep.subr.mxu0 0.0
    %2058 = vmatpush1.msra.mxu0 0.0
    %2059 = vmatprep.subr.mxu0 0.0
    %2060 = vmatpush1.msra.mxu0 0.0
    %2061 = vmatprep.subr.mxu0 0.0
    %2062 = vmatpush1.msra.mxu0 0.0
    %2063 = vmatprep.subr.mxu0 0.0
    %2064 = vmatpush1.msra.mxu0 0.0
    %2065 = vmatprep.subr.mxu0 0.0
    %2066 = vmatpush1.msra.mxu0 0.0
    %2067 = vmatprep.subr.mxu0 0.0
    %2068 = vmatpush1.msra.mxu0 0.0
    %2069 = vmatprep.subr.mxu0 0.0
    %2070 = vmatpush1.msra.mxu0 0.0
    %2071 = vmatprep.subr.mxu0 0.0
    %2072 = vmatpush1.msra.mxu0 %v41
    %2073 = vmatprep.subr.mxu0 0.0
    %2074 = vmatpush1.msra.mxu0 %v40
    %2075 = vmatprep.subr.mxu0 0.0
    %2076 = vmatpush1.msra.mxu0 %v39
    %2077 = vmatprep.subr.mxu0 0.0
    %2078 = vmatpush1.msra.mxu0 %v38
    %2079 = vmatprep.subr.mxu0 0.0
    %2080 = vmatpush2.msra.mxu0 0.0
    %2081 = vmatprep.subr.mxu0 0.0
    %2082 = vmatpush2.msra.mxu0 0.0
    %2083 = vmatprep.subr.mxu0 0.0
    %2084 = vmatpush2.msra.mxu0 0.0
    %2085 = vmatprep.subr.mxu0 0.0
    %2086 = vmatpush2.msra.mxu0 0.0
    %2087 = vmatprep.subr.mxu0 0.0
    %2088 = vmatpush2.msra.mxu0 0.0
    %2089 = vmatprep.subr.mxu0 0.0
    %2090 = vmatpush2.msra.mxu0 0.0
    %2091 = vmatprep.subr.mxu0 0.0
    %2092 = vmatpush2.msra.mxu0 0.0
    %2093 = vmatprep.subr.mxu0 0.0
    %2094 = vmatpush2.msra.mxu0 0.0
    %2095 = vmatprep.subr.mxu0 0.0
    %2096 = vmatpush2.msra.mxu0 0.0
    %2097 = vmatprep.subr.mxu0 0.0
    %2098 = vmatpush2.msra.mxu0 0.0
    %2099 = vmatprep.subr.mxu0 0.0
    %2100 = vmatpush2.msra.mxu0 0.0
    %2101 = vmatprep.subr.mxu0 0.0
    %2102 = vmatpush2.msra.mxu0 0.0
    %2103 = vmatprep.subr.mxu0 0.0
    %2104 = vmatpush2.msra.mxu0 0.0
    %2105 = vmatprep.subr.mxu0 0.0
    %2106 = vmatpush2.msra.mxu0 0.0
    %2107 = vmatprep.subr.mxu0 0.0
    %2108 = vmatpush2.msra.mxu0 0.0
    %2109 = vmatprep.subr.mxu0 0.0
    %2110 = vmatpush2.msra.mxu0 0.0
    %2111 = vmatprep.mubr.f32.mxu0 0.0
    %2112 = vmatmul.mubr.f32.gmra.mxu0 %v1945
    %v2113 = vpop.f32.mrf.mxu0
    %v2114 = vadd.f32 %v61, %v2113
    %v2115 = vpop.f32.mrf.mxu0
    %2116 = vdwg.mxu0
    %v2117 = vxor.u32 %v2114, 2147483648
    %v2118 = vmul.f32 %v2117, 1.442695
    %v2119 = vpow.pop %v2118
    %v2120 = vadd.f32 %v2119, 1.0
    %v2121 = vrcp.pop %v2120
    %v2122 = vmul.f32 1.0, %v2121
    %v2123 = vtanh.pop %v2114
    %v2124 = vmul.f32 %v2122, %v1863
    %2126 = vrot.lane.b32.xlu0 %v2123, 64
    %v2127 = vpop.permute.xlu0 %2126
    %v2129 = vmul.f32 %v2122, %v2127
    %2131 = vrot.lane.b32.xlu0 %v2129, 32
    %v2132 = vpop.permute.xlu0 %2131
    %v2134 = vadd.f32 %v2124, %v2132
    %v2135 = vtanh.pop %v2134
    %2137 = vrot.lane.b32.xlu0 %v2135, 64
    %v2138 = vpop.permute.xlu0 %2137
    %v2140 = vmul.f32 %v2122, %v2138
    %v2141 = vsel %vm147, %v2044, 0
    %2143 = vmatprep.subr.mxu0 0.0
    %2144 = vmatpush1.msra.mxu0 0.0
    %2145 = vmatprep.subr.mxu0 0.0
    %2146 = vmatpush1.msra.mxu0 0.0
    %2147 = vmatprep.subr.mxu0 0.0
    %2148 = vmatpush1.msra.mxu0 0.0
    %2149 = vmatprep.subr.mxu0 0.0
    %2150 = vmatpush1.msra.mxu0 0.0
    %2151 = vmatprep.subr.mxu0 0.0
    %2152 = vmatpush1.msra.mxu0 0.0
    %2153 = vmatprep.subr.mxu0 0.0
    %2154 = vmatpush1.msra.mxu0 0.0
    %2155 = vmatprep.subr.mxu0 0.0
    %2156 = vmatpush1.msra.mxu0 0.0
    %2157 = vmatprep.subr.mxu0 0.0
    %2158 = vmatpush1.msra.mxu0 0.0
    %2159 = vmatprep.subr.mxu0 0.0
    %2160 = vmatpush1.msra.mxu0 0.0
    %2161 = vmatprep.subr.mxu0 0.0
    %2162 = vmatpush1.msra.mxu0 0.0
    %2163 = vmatprep.subr.mxu0 0.0
    %2164 = vmatpush1.msra.mxu0 0.0
    %2165 = vmatprep.subr.mxu0 0.0
    %2166 = vmatpush1.msra.mxu0 0.0
    %2167 = vmatprep.subr.mxu0 0.0
    %2168 = vmatpush1.msra.mxu0 %v45
    %2169 = vmatprep.subr.mxu0 0.0
    %2170 = vmatpush1.msra.mxu0 %v44
    %2171 = vmatprep.subr.mxu0 0.0
    %2172 = vmatpush1.msra.mxu0 %v43
    %2173 = vmatprep.subr.mxu0 0.0
    %2174 = vmatpush1.msra.mxu0 %v42
    %2175 = vmatprep.subr.mxu0 0.0
    %2176 = vmatpush2.msra.mxu0 0.0
    %2177 = vmatprep.subr.mxu0 0.0
    %2178 = vmatpush2.msra.mxu0 0.0
    %2179 = vmatprep.subr.mxu0 0.0
    %2180 = vmatpush2.msra.mxu0 0.0
    %2181 = vmatprep.subr.mxu0 0.0
    %2182 = vmatpush2.msra.mxu0 0.0
    %2183 = vmatprep.subr.mxu0 0.0
    %2184 = vmatpush2.msra.mxu0 0.0
    %2185 = vmatprep.subr.mxu0 0.0
    %2186 = vmatpush2.msra.mxu0 0.0
    %2187 = vmatprep.subr.mxu0 0.0
    %2188 = vmatpush2.msra.mxu0 0.0
    %2189 = vmatprep.subr.mxu0 0.0
    %2190 = vmatpush2.msra.mxu0 0.0
    %2191 = vmatprep.subr.mxu0 0.0
    %2192 = vmatpush2.msra.mxu0 0.0
    %2193 = vmatprep.subr.mxu0 0.0
    %2194 = vmatpush2.msra.mxu0 0.0
    %2195 = vmatprep.subr.mxu0 0.0
    %2196 = vmatpush2.msra.mxu0 0.0
    %2197 = vmatprep.subr.mxu0 0.0
    %2198 = vmatpush2.msra.mxu0 0.0
    %2199 = vmatprep.subr.mxu0 0.0
    %2200 = vmatpush2.msra.mxu0 0.0
    %2201 = vmatprep.subr.mxu0 0.0
    %2202 = vmatpush2.msra.mxu0 0.0
    %2203 = vmatprep.subr.mxu0 0.0
    %2204 = vmatpush2.msra.mxu0 0.0
    %2205 = vmatprep.subr.mxu0 0.0
    %2206 = vmatpush2.msra.mxu0 0.0
    %2207 = vmatprep.mubr.f32.mxu0 0.0
    %2208 = vmatmul.mubr.f32.gmra.mxu0 %v2141
    %v2209 = vpop.f32.mrf.mxu0
    %v2210 = vadd.f32 %v66, %v2209
    %v2211 = vpop.f32.mrf.mxu0
    %2212 = vdwg.mxu0
    %2214 = vrot.lane.b32.xlu0 %v2140, 32
    %v2215 = vpop.permute.xlu0 %2214
    %v2216 = vsel %vm147, %v2215, 0
    %2218 = vmatprep.subr.mxu0 0.0
    %2219 = vmatpush1.msra.mxu0 0.0
    %2220 = vmatprep.subr.mxu0 0.0
    %2221 = vmatpush1.msra.mxu0 0.0
    %2222 = vmatprep.subr.mxu0 0.0
    %2223 = vmatpush1.msra.mxu0 0.0
    %2224 = vmatprep.subr.mxu0 0.0
    %2225 = vmatpush1.msra.mxu0 0.0
    %2226 = vmatprep.subr.mxu0 0.0
    %2227 = vmatpush1.msra.mxu0 0.0
    %2228 = vmatprep.subr.mxu0 0.0
    %2229 = vmatpush1.msra.mxu0 0.0
    %2230 = vmatprep.subr.mxu0 0.0
    %2231 = vmatpush1.msra.mxu0 0.0
    %2232 = vmatprep.subr.mxu0 0.0
    %2233 = vmatpush1.msra.mxu0 0.0
    %2234 = vmatprep.subr.mxu0 0.0
    %2235 = vmatpush1.msra.mxu0 0.0
    %2236 = vmatprep.subr.mxu0 0.0
    %2237 = vmatpush1.msra.mxu0 0.0
    %2238 = vmatprep.subr.mxu0 0.0
    %2239 = vmatpush1.msra.mxu0 0.0
    %2240 = vmatprep.subr.mxu0 0.0
    %2241 = vmatpush1.msra.mxu0 0.0
    %2242 = vmatprep.subr.mxu0 0.0
    %2243 = vmatpush1.msra.mxu0 %v49
    %2244 = vmatprep.subr.mxu0 0.0
    %2245 = vmatpush1.msra.mxu0 %v48
    %2246 = vmatprep.subr.mxu0 0.0
    %2247 = vmatpush1.msra.mxu0 %v47
    %2248 = vmatprep.subr.mxu0 0.0
    %2249 = vmatpush1.msra.mxu0 %v46
    %2250 = vmatprep.subr.mxu0 0.0
    %2251 = vmatpush2.msra.mxu0 0.0
    %2252 = vmatprep.subr.mxu0 0.0
    %2253 = vmatpush2.msra.mxu0 0.0
    %2254 = vmatprep.subr.mxu0 0.0
    %2255 = vmatpush2.msra.mxu0 0.0
    %2256 = vmatprep.subr.mxu0 0.0
    %2257 = vmatpush2.msra.mxu0 0.0
    %2258 = vmatprep.subr.mxu0 0.0
    %2259 = vmatpush2.msra.mxu0 0.0
    %2260 = vmatprep.subr.mxu0 0.0
    %2261 = vmatpush2.msra.mxu0 0.0
    %2262 = vmatprep.subr.mxu0 0.0
    %2263 = vmatpush2.msra.mxu0 0.0
    %2264 = vmatprep.subr.mxu0 0.0
    %2265 = vmatpush2.msra.mxu0 0.0
    %2266 = vmatprep.subr.mxu0 0.0
    %2267 = vmatpush2.msra.mxu0 0.0
    %2268 = vmatprep.subr.mxu0 0.0
    %2269 = vmatpush2.msra.mxu0 0.0
    %2270 = vmatprep.subr.mxu0 0.0
    %2271 = vmatpush2.msra.mxu0 0.0
    %2272 = vmatprep.subr.mxu0 0.0
    %2273 = vmatpush2.msra.mxu0 0.0
    %2274 = vmatprep.subr.mxu0 0.0
    %2275 = vmatpush2.msra.mxu0 0.0
    %2276 = vmatprep.subr.mxu0 0.0
    %2277 = vmatpush2.msra.mxu0 0.0
    %2278 = vmatprep.subr.mxu0 0.0
    %2279 = vmatpush2.msra.mxu0 0.0
    %2280 = vmatprep.subr.mxu0 0.0
    %2281 = vmatpush2.msra.mxu0 0.0
    %2282 = vmatprep.mubr.f32.mxu0 0.0
    %2283 = vmatmul.mubr.f32.gmra.mxu0 %v2216
    %v2284 = vpop.f32.mrf.mxu0
    %v2285 = vadd.f32 0.0, %v2284
    %v2286 = vpop.f32.mrf.mxu0
    %2287 = vdwg.mxu0
    %v2288 = vadd.f32 %v2210, %v2285
    %v2289 = vxor.u32 %v2288, 2147483648
    %v2290 = vmul.f32 %v2289, 1.442695
    %v2291 = vpow.pop %v2290
    %v2292 = vadd.f32 %v2291, 1.0
    %v2293 = vrcp.pop %v2292
    %v2294 = vmul.f32 1.0, %v2293
    %v2295 = vtanh.pop %v2288
    %v2296 = vmul.f32 %v2294, %v2035
    %2298 = vrot.lane.b32.xlu0 %v2295, 64
    %v2299 = vpop.permute.xlu0 %2298
    %v2301 = vmul.f32 %v2294, %v2299
    %2303 = vrot.lane.b32.xlu0 %v2301, 32
    %v2304 = vpop.permute.xlu0 %2303
    %v2306 = vadd.f32 %v2296, %v2304
    %v2307 = vtanh.pop %v2306
    %2309 = vrot.lane.b32.xlu0 %v2307, 64
    %v2310 = vpop.permute.xlu0 %2309
    %v2312 = vmul.f32 %v2294, %v2310
    %2314 = vrot.lane.b32.xlu0 %v2312, 32
    %v2315 = vpop.permute.xlu0 %2314
    %2317 = vst.msk [vmem:[#allocation2 + $0xe] sm:$0x3] %vm419, %v2315
    %v2318 = vld [vmem:[#allocation2] sm:$0xff]
    %v2319 = vld [vmem:[#allocation2 + $0x8] sm:$0xff]
    %v2320 = vlaneseq
    %v2321 = vshrl.u32 %v2320, 7
    %v2322 = vsub.s32 0, %v2321
    %v2323 = vrot.slane %v67, %v2322
    %v2325 = vsel %vm147, %v2318, 0
    %v2328 = vsel %vm147, %v2319, 0
    %2330 = vmatprep.subr.mxu0 0.0
    %2331 = vmatpush1.msra.mxu0 0.0
    %2332 = vmatprep.subr.mxu0 0.0
    %2333 = vmatpush1.msra.mxu0 0.0
    %2334 = vmatprep.subr.mxu0 0.0
    %2335 = vmatpush1.msra.mxu0 0.0
    %2336 = vmatprep.subr.mxu0 0.0
    %2337 = vmatpush1.msra.mxu0 0.0
    %2338 = vmatprep.subr.mxu0 0.0
    %2339 = vmatpush1.msra.mxu0 0.0
    %2340 = vmatprep.subr.mxu0 0.0
    %2341 = vmatpush1.msra.mxu0 0.0
    %2342 = vmatprep.subr.mxu0 0.0
    %2343 = vmatpush1.msra.mxu0 0.0
    %2344 = vmatprep.subr.mxu0 0.0
    %2345 = vmatpush1.msra.mxu0 0.0
    %2346 = vmatprep.subr.mxu0 0.0
    %2347 = vmatpush1.msra.mxu0 0.0
    %2348 = vmatprep.subr.mxu0 0.0
    %2349 = vmatpush1.msra.mxu0 0.0
    %2350 = vmatprep.subr.mxu0 0.0
    %2351 = vmatpush1.msra.mxu0 0.0
    %2352 = vmatprep.subr.mxu0 0.0
    %2353 = vmatpush1.msra.mxu0 0.0
    %2354 = vmatprep.subr.mxu0 0.0
    %2355 = vmatpush1.msra.mxu0 %v55
    %2356 = vmatprep.subr.mxu0 0.0
    %2357 = vmatpush1.msra.mxu0 %v54
    %2358 = vmatprep.subr.mxu0 0.0
    %2359 = vmatpush1.msra.mxu0 %v53
    %2360 = vmatprep.subr.mxu0 0.0
    %2361 = vmatpush1.msra.mxu0 %v52
    %2362 = vmatprep.subr.mxu0 0.0
    %2363 = vmatpush2.msra.mxu0 0.0
    %2364 = vmatprep.subr.mxu0 0.0
    %2365 = vmatpush2.msra.mxu0 0.0
    %2366 = vmatprep.subr.mxu0 0.0
    %2367 = vmatpush2.msra.mxu0 0.0
    %2368 = vmatprep.subr.mxu0 0.0
    %2369 = vmatpush2.msra.mxu0 0.0
    %2370 = vmatprep.subr.mxu0 0.0
    %2371 = vmatpush2.msra.mxu0 0.0
    %2372 = vmatprep.subr.mxu0 0.0
    %2373 = vmatpush2.msra.mxu0 0.0
    %2374 = vmatprep.subr.mxu0 0.0
    %2375 = vmatpush2.msra.mxu0 0.0
    %2376 = vmatprep.subr.mxu0 0.0
    %2377 = vmatpush2.msra.mxu0 0.0
    %2378 = vmatprep.subr.mxu0 0.0
    %2379 = vmatpush2.msra.mxu0 0.0
    %2380 = vmatprep.subr.mxu0 0.0
    %2381 = vmatpush2.msra.mxu0 0.0
    %2382 = vmatprep.subr.mxu0 0.0
    %2383 = vmatpush2.msra.mxu0 0.0
    %2384 = vmatprep.subr.mxu0 0.0
    %2385 = vmatpush2.msra.mxu0 0.0
    %2386 = vmatprep.subr.mxu0 0.0
    %2387 = vmatpush2.msra.mxu0 0.0
    %2388 = vmatprep.subr.mxu0 0.0
    %2389 = vmatpush2.msra.mxu0 0.0
    %2390 = vmatprep.subr.mxu0 0.0
    %2391 = vmatpush2.msra.mxu0 0.0
    %2392 = vmatprep.subr.mxu0 0.0
    %2393 = vmatpush2.msra.mxu0 0.0
    %2394 = vmatprep.mubr.f32.mxu0 0.0
    %2395 = vmatmul.mubr.f32.gmra.mxu0 %v2325
    %v2396 = vpop.f32.mrf.mxu0
    %v2397 = vadd.f32 %v2323, %v2396
    %v2398 = vpop.f32.mrf.mxu0
    %2399 = vmatprep.mubr.f32.mxu0 0.0
    %2400 = vmatmul.mubr.f32.gmra.mxu0 %v2328
    %v2401 = vpop.f32.mrf.mxu0
    %v2402 = vadd.f32 %v2323, %v2401
    %v2403 = vpop.f32.mrf.mxu0
    %2404 = vdwg.mxu0
    %v2405 = vxor.u32 %v2397, 2147483648
    %v2406 = vxor.u32 %v2402, 2147483648
    %v2407 = vmul.f32 %v2405, 1.442695
    %v2408 = vpow.pop %v2407
    %v2409 = vmul.f32 %v2406, 1.442695
    %v2410 = vpow.pop %v2409
    %v2411 = vadd.f32 %v2408, 1.0
    %v2412 = vadd.f32 %v2410, 1.0
    %v2413 = vrcp.pop %v2411
    %v2414 = vmul.f32 1.0, %v2413
    %v2415 = vrcp.pop %v2412
    %v2416 = vmul.f32 1.0, %v2415
    %2417 = vst [vmem:[#allocation8] sm:$0xff] %v2414
    %2418 = vst [vmem:[#allocation8 + $0x8] sm:$0xff] %v2416
    // Predicated region
    $region18: #{tpu_custom_call.1} parent=1 // pred_check
      _
    $region19: #{tpu_custom_call.1} parent=1 // pred_check_branch
      %2420 = sbr.rel (0) target = $region21
    $region20: #{tpu_custom_call.1} parent=1 // pred_region
      %s2422 = ssub.s32 256, 256
      %2423 = vsyncadd [#allocation5], %s2422
      %s2424 = sshll.u32 [#allocation8], 4
      %s2425 = int_to_ptr.vmem [resolvable:$true] %s2424
      %2430 = dma.vmem_to_hbm [thread:$0]  %s2425, 256, %s2, [#allocation5], 128, 128, 8
    $region21: #{tpu_custom_call.1} parent=1 // pred_fallthru
      _
    // Predicated region
    $region22: #{tpu_custom_call.1} parent=1 // pred_check
      _
    $region23: #{tpu_custom_call.1} parent=1 // pred_check_branch
      %2432 = sbr.rel (0) target = $region25
    $region24: #{tpu_custom_call.1} parent=1 // pred_region
      %2433 = dma.done [#allocation5], 256
    $region25: #{tpu_custom_call.1} parent=1 // pred_fallthru
      _
    %2434 = vsyncpa [#allocation4], 1
    %2435 = vsyncpa [#allocation7], 1
    %2436 = vsyncpa [#allocation5], 1

</llo_original>
